<compile_context>
chip_gen: v7x
topology: tpu7x:2x2x1
jax: 0.10.0
libtpu: 0.0.40
codegen_flags: <defaults>
</compile_context>

<pallas_src>
import functools

import numpy as np
import jax
import jax.numpy as jnp
from jax import lax
from jax.experimental import pallas as pl
from jax.experimental.pallas import tpu as pltpu

LEAKY_SLOPE = 0.1


# ----------------------------- Pallas kernel -------------------------------
def _yolo_fused_kernel(xe_ref, xo_ref, m1e_ref, m1o_ref, b1_ref,
                       m2_ref, b2_ref, m3_ref, b3_ref, m4_ref, b4_ref,
                       wreg_ref, breg_ref, whead_ref, bhead_ref,
                       o_ref, *, batch, out_hw):
    """Whole YOLO head: 4 convs + reg FC + fused (padded) cls/resp/offset head.

    Conv-tower activations use a 2-D layout [h*B + b, w*C + c].  A 3x3 conv is
    ONE matmul against the kh-concatenated tap matrix (kw taps / stride / W
    zero-pad folded in), plus per-kh sublane shifts with zero fill for the H
    taps.  The stride-2 first block consumes pre-split even/odd-h row slabs so
    its H decimation is also just a shift.
    """
    f32 = jnp.float32
    sc = b1_ref.shape[1]                    # columns per kh slice = w_out * C

    def leaky(v):
        return jnp.where(v >= 0.0, v, f32(LEAKY_SLOPE) * v)

    def shift_down(z):                      # out[r] = z[r - B]; top B rows zero
        pad = jnp.zeros((batch, z.shape[1]), z.dtype)
        return jnp.concatenate([pad, z[:z.shape[0] - batch]], axis=0)

    def shift_up(z):                        # out[r] = z[r + B]; bottom B rows zero
        pad = jnp.zeros((batch, z.shape[1]), z.dtype)
        return jnp.concatenate([z[batch:], pad], axis=0)

    # ---- local_layer block_1 (3x3, stride 2) on even/odd input-row slabs ----
    ze = jnp.dot(xe_ref[...], m1e_ref[...], preferred_element_type=f32)  # kh=1
    zo = jnp.dot(xo_ref[...], m1o_ref[...], preferred_element_type=f32)  # kh=0|2
    y = leaky(b1_ref[...] + ze + shift_down(zo[:, :sc]) + zo[:, sc:])

    # ---- local_layer blocks 2..4 (3x3, stride 1): one matmul each ----
    def conv_s1(y, m_ref, b_ref):
        z = jnp.dot(y.astype(jnp.bfloat16), m_ref[...],
                    preferred_element_type=f32)             # (S*B, 3*S*C)
        acc = (b_ref[...] + shift_down(z[:, :sc]) + z[:, sc:2 * sc]
               + shift_up(z[:, 2 * sc:]))
        return leaky(acc)

    y = conv_s1(y, m2_ref, b2_ref)
    y = conv_s1(y, m3_ref, b3_ref)
    y = conv_s1(y, m4_ref, b4_ref)

    # ---- reg_layer Linear + LeakyReLU (dropout in eval = identity) ----
    # Lane-concat the per-h row slabs into a single [B, S*S*C] LHS -> one dot.
    lhs = jnp.concatenate(
        [y[h * batch:(h + 1) * batch, :] for h in range(out_hw)], axis=1)
    hid = jnp.dot(lhs.astype(jnp.bfloat16), wreg_ref[...],
                  preferred_element_type=f32)
    hid = leaky(hid + breg_ref[...])

    # ---- fused cls|response|offset heads (anchors folded into bias),
    #      padded to a lane-dense 256-wide output slab ----
    out = jnp.dot(hid.astype(jnp.bfloat16), whead_ref[...],
                  preferred_element_type=f32)
    o_ref[...] = (out + bhead_ref[...]).astype(o_ref.dtype)


# --------------------------- parameter preparation --------------------------
def _conv_tap_mats(w_oihw, w_in, w_out, stride):
    """Per-kh matrices folding kw taps, stride and W zero-padding.

    Returns a list of 3 arrays, each [w_in*Cin, w_out*Cout]."""
    w = np.asarray(w_oihw, np.float32)              # [Cout, Cin, 3, 3]
    cout, cin = w.shape[0], w.shape[1]
    mats = []
    for kh in range(3):
        m = np.zeros((w_in * cin, w_out * cout), np.float32)
        for wo in range(w_out):
            for kw in range(3):
                wi = stride * wo + kw - 1
                if 0 <= wi < w_in:
                    m[wi * cin:(wi + 1) * cin,
                      wo * cout:(wo + 1) * cout] = w[:, :, kh, kw].T  # [ci,co]
        mats.append(m)
    return mats


def prepare_params(params, *, cls_num, bbox_num, scale_size, feat_ch, hidden):
    """One-time (outside jit) reformat of torch-layout params into the fused
    kernel operand set.  Nothing here depends on the batch size."""
    C, S = feat_ch, scale_size
    w_in = 2 * S
    sc = S * C

    def bf16(x):
        return jnp.asarray(x, jnp.bfloat16)

    def f32(x):
        return jnp.asarray(x, jnp.float32)

    # Conv tap matrices: layer 1 split into even-h (kh=1) / odd-h (kh=0,2)
    # parts; layers 2..4 concatenated along N (one matmul per layer).
    m1 = _conv_tap_mats(params['l1_w'], w_in, S, 2)
    m1e = m1[1]
    m1o = np.concatenate([m1[0], m1[2]], axis=1)
    m2 = np.concatenate(_conv_tap_mats(params['l2_w'], S, S, 1), axis=1)
    m3 = np.concatenate(_conv_tap_mats(params['l3_w'], S, S, 1), axis=1)
    m4 = np.concatenate(_conv_tap_mats(params['l4_w'], S, S, 1), axis=1)

    def brow(b):
        return np.tile(np.asarray(b, np.float32), S)[None, :]

    # reg weight [C*S*S, hidden], torch .view(NCHW) input index c*S*S + h*S + w
    # -> kernel LHS lane index h*(S*C) + w*C + c.
    wreg = np.asarray(params['reg_w'], np.float32).reshape(C, S, S, hidden)
    wreg = wreg.transpose(1, 2, 0, 3).reshape(S * S * C, hidden)

    # Heads fused along N; anchor offsets folded into the offset-head bias;
    # padded to the next multiple of 128 lanes for a lane-dense output store.
    whead = np.concatenate([np.asarray(params['cls_w'], np.float32),
                            np.asarray(params['resp_w'], np.float32),
                            np.asarray(params['off_w'], np.float32)], axis=1)
    anchor = np.zeros((bbox_num, 4, S, S), np.float32)
    anchor[:, 0, :, :] = np.arange(S, dtype=np.float32)[None, None, :]  # x = w
    anchor[:, 1, :, :] = np.arange(S, dtype=np.float32)[None, :, None]  # y = h
    bhead = np.concatenate(
        [np.asarray(params['cls_b'], np.float32),
         np.asarray(params['resp_b'], np.float32),
         np.asarray(params['off_b'], np.float32) + anchor.reshape(-1)])
    n_out = whead.shape[1]
    n_pad = -n_out % 128
    whead = np.pad(whead, ((0, 0), (0, n_pad)))
    bhead = np.pad(bhead, (0, n_pad))[None, :]

    return {
        'm1e': bf16(m1e), 'm1o': bf16(m1o), 'b1': f32(brow(params['l1_b'])),
        'm2': bf16(m2), 'b2': f32(brow(params['l2_b'])),
        'm3': bf16(m3), 'b3': f32(brow(params['l3_b'])),
        'm4': bf16(m4), 'b4': f32(brow(params['l4_b'])),
        'wreg': bf16(wreg), 'breg': f32(params['reg_b'])[None, :],
        'whead': bf16(whead), 'bhead': f32(bhead),
        'sc': sc,
    }


# ------------------------------- forward pass --------------------------------
def yolo_forward(prep, feat, *, cls_num, bbox_num, scale_size):
    """YOLO forward (conv_mode=False, target=None, eval), single pallas_call.

    feat: [B, C, 2*S, 2*S] NCHW feature map (stand-in for darknet_19 output).
    """
    # TODO(synk): darknet_19 backbone definition is not provided; `feat` stands
    # in for its output feature map (channels scaled down from 1024).
    # TODO(synk): conv_block definition not provided; assumed
    # Conv2d(3x3, pad=1, bias=True) + LeakyReLU(0.1), no BatchNorm.
    B, C, h_in, w_in = feat.shape
    S = scale_size
    assert h_in == 2 * S and w_in == 2 * S
    assert prep['m1e'].shape[0] == w_in * C, "prep/feat channel mismatch"

    # NCHW -> [h*B + b, w*C + c], pre-split into even/odd-h slabs (folds the
    # stride-2 H decimation of block_1), cast to bf16 (MXU-native operands).
    xt = jnp.transpose(feat, (2, 0, 3, 1))                 # (H, B, W, C)
    xe = xt[0::2].reshape(S * B, w_in * C).astype(jnp.bfloat16)
    xo = xt[1::2].reshape(S * B, w_in * C).astype(jnp.bfloat16)

    n_out = (cls_num + bbox_num + bbox_num * 4) * S * S
    n_pad = prep['whead'].shape[1]                          # lane-dense width
    kernel = functools.partial(_yolo_fused_kernel, batch=B, out_hw=S)
    out = pl.pallas_call(
        kernel,
        out_shape=jax.ShapeDtypeStruct((B, n_pad), jnp.float32),
        in_specs=[pl.BlockSpec(memory_space=pltpu.MemorySpace.VMEM)
                  for _ in range(15)],
        out_specs=pl.BlockSpec(memory_space=pltpu.MemorySpace.VMEM),
    )(xe, xo, prep['m1e'], prep['m1o'], prep['b1'],
      prep['m2'], prep['b2'], prep['m3'], prep['b3'], prep['m4'], prep['b4'],
      prep['wreg'], prep['breg'], prep['whead'], prep['bhead'])
    out = out[:, :n_out]                                    # drop lane padding

    n_cls = cls_num * S * S
    n_resp = bbox_num * S * S
    pred_cls = out[:, :n_cls].reshape(B, cls_num, S, S)
    pred_response = out[:, n_cls:n_cls + n_resp].reshape(B, bbox_num, S, S)
    pred_bbox = out[:, n_cls + n_resp:].reshape(B, bbox_num * 4, S, S)
    # TODO(synk): yolo_decoder / yolov1_loss are not provided; return raw preds.
    return pred_cls, pred_response, pred_bbox


# --------------------------------- params ------------------------------------
def init_params(key, *, cls_num, bbox_num, scale_size, feat_ch, hidden):
    """Torch-layout params (Conv2d OIHW; Linear stored as [in, out])."""
    C, S = feat_ch, scale_size
    keys = jax.random.split(key, 12)

    def w(k, shape, s=0.05):
        return s * jax.random.normal(k, shape, jnp.float32)

    return {
        # local_layer conv blocks; biases zeroed per fill_fc_weights.
        'l1_w': w(keys[0], (C, C, 3, 3)), 'l1_b': jnp.zeros((C,), jnp.float32),
        'l2_w': w(keys[1], (C, C, 3, 3)), 'l2_b': jnp.zeros((C,), jnp.float32),
        'l3_w': w(keys[2], (C, C, 3, 3)), 'l3_b': jnp.zeros((C,), jnp.float32),
        'l4_w': w(keys[3], (C, C, 3, 3)), 'l4_b': jnp.zeros((C,), jnp.float32),
        # reg_layer Linear(C*S*S -> hidden)
        'reg_w': w(keys[4], (C * S * S, hidden)), 'reg_b': w(keys[5], (hidden,)),
        # prediction heads
        'cls_w': w(keys[6], (hidden, cls_num * S * S)),
        'cls_b': w(keys[7], (cls_num * S * S,)),
        'resp_w': w(keys[8], (hidden, bbox_num * S * S)),
        'resp_b': w(keys[9], (bbox_num * S * S,)),
        'off_w': w(keys[10], (hidden, bbox_num * 4 * S * S)),
        'off_b': w(keys[11], (bbox_num * 4 * S * S,)),
    }


# ------------------------- pure-JAX reference (check) ------------------------
def yolo_reference(params, feat, *, cls_num, bbox_num, scale_size):
    """XLA reference of the PyTorch forward; weights AND activations are
    bf16-round-tripped exactly like the kernel, so only accumulation-order
    differences remain."""
    q = lambda a: jnp.asarray(a, jnp.float32).astype(jnp.bfloat16).astype(jnp.float32)
    leaky = lambda v: jnp.where(v >= 0, v, LEAKY_SLOPE * v)

    def conv(x, wgt, b, stride):
        y = lax.conv_general_dilated(q(x), q(wgt), (stride, stride),
                                     ((1, 1), (1, 1)),
                                     dimension_numbers=('NCHW', 'OIHW', 'NCHW'))
        return leaky(y + jnp.asarray(b, jnp.float32)[None, :, None, None])

    x = conv(feat, params['l1_w'], params['l1_b'], 2)
    x = conv(x, params['l2_w'], params['l2_b'], 1)
    x = conv(x, params['l3_w'], params['l3_b'], 1)
    x = conv(x, params['l4_w'], params['l4_b'], 1)
    B, S = feat.shape[0], scale_size
    flat = x.reshape(B, -1)
    h = leaky(q(flat) @ q(params['reg_w']) + params['reg_b'])
    hq = q(h)
    cls = (hq @ q(params['cls_w']) + params['cls_b']).reshape(B, cls_num, S, S)
    resp = (hq @ q(params['resp_w']) + params['resp_b']).reshape(B, bbox_num, S, S)
    off = (hq @ q(params['off_w']) + params['off_b']).reshape(B, bbox_num, 4, S, S)
    xs = jnp.arange(S, dtype=jnp.float32)
    anchor = jnp.stack([jnp.broadcast_to(xs[None, :], (S, S)),
                        jnp.broadcast_to(xs[:, None], (S, S))], axis=0)
    off = off.at[:, :, :2, :, :].add(anchor[None, None])
    return cls, resp, off.reshape(B, bbox_num * 4, S, S)


if __name__ == "__main__":
    cls_num, bbox_num, scale_size = 4, 2, 4
    feat_ch, hidden, B = 32, 128, 2

    key = jax.random.PRNGKey(0)
    k_feat, k_params = jax.random.split(key)
    feat = jax.random.normal(
        k_feat, (B, feat_ch, 2 * scale_size, 2 * scale_size), jnp.float32)
    params = init_params(k_params, cls_num=cls_num, bbox_num=bbox_num,
                         scale_size=scale_size, feat_ch=feat_ch, hidden=hidden)
    prep = prepare_params(params, cls_num=cls_num, bbox_num=bbox_num,
                          scale_size=scale_size, feat_ch=feat_ch, hidden=hidden)

    fwd = jax.jit(functools.partial(
        yolo_forward, cls_num=cls_num, bbox_num=bbox_num, scale_size=scale_size))
    pred_cls, pred_response, pred_bbox = fwd(prep, feat)
    jax.block_until_ready((pred_cls, pred_response, pred_bbox))

    assert pred_cls.shape == (B, cls_num, scale_size, scale_size)
    assert pred_response.shape == (B, bbox_num, scale_size, scale_size)
    assert pred_bbox.shape == (B, bbox_num * 4, scale_size, scale_size)

    ref_cls, ref_resp, ref_bbox = yolo_reference(
        params, feat, cls_num=cls_num, bbox_num=bbox_num, scale_size=scale_size)
    err = max(float(jnp.max(jnp.abs(pred_cls - ref_cls))),
              float(jnp.max(jnp.abs(pred_response - ref_resp))),
              float(jnp.max(jnp.abs(pred_bbox - ref_bbox))))
    assert err < 0.05, f"mismatch vs reference: max abs err {err}"
    print("KERNEL_OK")
</pallas_src>

<mosaic_0001>
module attributes {stable_mosaic.version = 11 : i64} {
  func.func @_yolo_fused_kernel(%arg0: memref<8x256xbf16, #tpu.memory_space<vmem>>, %arg1: memref<8x256xbf16, #tpu.memory_space<vmem>>, %arg2: memref<256x128xbf16, #tpu.memory_space<vmem>>, %arg3: memref<256x256xbf16, #tpu.memory_space<vmem>>, %arg4: memref<1x128xf32, #tpu.memory_space<vmem>>, %arg5: memref<128x384xbf16, #tpu.memory_space<vmem>>, %arg6: memref<1x128xf32, #tpu.memory_space<vmem>>, %arg7: memref<128x384xbf16, #tpu.memory_space<vmem>>, %arg8: memref<1x128xf32, #tpu.memory_space<vmem>>, %arg9: memref<128x384xbf16, #tpu.memory_space<vmem>>, %arg10: memref<1x128xf32, #tpu.memory_space<vmem>>, %arg11: memref<512x128xbf16, #tpu.memory_space<vmem>>, %arg12: memref<1x128xf32, #tpu.memory_space<vmem>>, %arg13: memref<128x256xbf16, #tpu.memory_space<vmem>>, %arg14: memref<1x256xf32, #tpu.memory_space<vmem>>, %arg15: memref<2x256xf32, #tpu.memory_space<vmem>>) attributes {dimension_semantics = [], scalar_prefetch = 0 : i64, scratch_operands = 0 : i64, tpu.core_type = #tpu.core_type<tc>} {
    %c0 = arith.constant 0 : index
    %c0_0 = arith.constant 0 : index
    %0 = vector.load %arg0[%c0, %c0_0] : memref<8x256xbf16, #tpu.memory_space<vmem>>, vector<8x256xbf16>
    %c0_1 = arith.constant 0 : index
    %c0_2 = arith.constant 0 : index
    %1 = vector.load %arg2[%c0_1, %c0_2] : memref<256x128xbf16, #tpu.memory_space<vmem>>, vector<256x128xbf16>
    %cst = arith.constant dense<0.000000e+00> : vector<8x128xf32>
    %2 = tpu.matmul %0, %1, %cst {dimension_numbers = #tpu.dot_dimension_numbers<[1], [0], [0], [1], [0, 0, 1, 1], [], []>} : vector<8x256xbf16>, vector<256x128xbf16>, vector<8x128xf32> -> vector<8x128xf32>
    %c0_3 = arith.constant 0 : index
    %c0_4 = arith.constant 0 : index
    %3 = vector.load %arg1[%c0_3, %c0_4] : memref<8x256xbf16, #tpu.memory_space<vmem>>, vector<8x256xbf16>
    %c0_5 = arith.constant 0 : index
    %c0_6 = arith.constant 0 : index
    %4 = vector.load %arg3[%c0_5, %c0_6] : memref<256x256xbf16, #tpu.memory_space<vmem>>, vector<256x256xbf16>
    %cst_7 = arith.constant dense<0.000000e+00> : vector<8x256xf32>
    %5 = tpu.matmul %3, %4, %cst_7 {dimension_numbers = #tpu.dot_dimension_numbers<[1], [0], [0], [1], [0, 0, 1, 1], [], []>} : vector<8x256xbf16>, vector<256x256xbf16>, vector<8x256xf32> -> vector<8x256xf32>
    %c0_8 = arith.constant 0 : index
    %c0_9 = arith.constant 0 : index
    %6 = vector.load %arg4[%c0_8, %c0_9] : memref<1x128xf32, #tpu.memory_space<vmem>>, vector<1x128xf32>
    %7 = vector.broadcast %6 : vector<1x128xf32> to vector<8x128xf32>
    %8 = arith.addf %7, %2 : vector<8x128xf32>
    %9 = vector.extract_strided_slice %5 {offsets = [0, 0], sizes = [8, 128], strides = [1, 1]} : vector<8x256xf32> to vector<8x128xf32>
    %cst_10 = arith.constant 0.000000e+00 : f32
    %10 = vector.broadcast %cst_10 : f32 to vector<2x128xf32>
    %11 = vector.extract_strided_slice %9 {offsets = [0, 0], sizes = [6, 128], strides = [1, 1]} : vector<8x128xf32> to vector<6x128xf32>
    %12 = tpu.concatenate %10, %11 in 0 : vector<2x128xf32>, vector<6x128xf32> -> vector<8x128xf32>
    %13 = arith.addf %8, %12 : vector<8x128xf32>
    %14 = vector.extract_strided_slice %5 {offsets = [0, 128], sizes = [8, 128], strides = [1, 1]} : vector<8x256xf32> to vector<8x128xf32>
    %15 = arith.addf %13, %14 : vector<8x128xf32>
    %cst_11 = arith.constant 0.000000e+00 : f32
    %16 = vector.broadcast %cst_11 : f32 to vector<8x128xf32>
    %17 = arith.cmpf oge, %15, %16 : vector<8x128xf32>
    %cst_12 = arith.constant 1.000000e-01 : f32
    %18 = vector.broadcast %cst_12 : f32 to vector<8x128xf32>
    %19 = arith.mulf %18, %15 : vector<8x128xf32>
    %20 = arith.select %17, %15, %19 : vector<8x128xi1>, vector<8x128xf32>
    %21 = arith.truncf %20 : vector<8x128xf32> to vector<8x128xbf16>
    %c0_13 = arith.constant 0 : index
    %c0_14 = arith.constant 0 : index
    %22 = vector.load %arg5[%c0_13, %c0_14] : memref<128x384xbf16, #tpu.memory_space<vmem>>, vector<128x384xbf16>
    %cst_15 = arith.constant dense<0.000000e+00> : vector<8x384xf32>
    %23 = tpu.matmul %21, %22, %cst_15 {dimension_numbers = #tpu.dot_dimension_numbers<[1], [0], [0], [1], [0, 0, 1, 1], [], []>} : vector<8x128xbf16>, vector<128x384xbf16>, vector<8x384xf32> -> vector<8x384xf32>
    %c0_16 = arith.constant 0 : index
    %c0_17 = arith.constant 0 : index
    %24 = vector.load %arg6[%c0_16, %c0_17] : memref<1x128xf32, #tpu.memory_space<vmem>>, vector<1x128xf32>
    %25 = vector.extract_strided_slice %23 {offsets = [0, 0], sizes = [8, 128], strides = [1, 1]} : vector<8x384xf32> to vector<8x128xf32>
    %cst_18 = arith.constant 0.000000e+00 : f32
    %26 = vector.broadcast %cst_18 : f32 to vector<2x128xf32>
    %27 = vector.extract_strided_slice %25 {offsets = [0, 0], sizes = [6, 128], strides = [1, 1]} : vector<8x128xf32> to vector<6x128xf32>
    %28 = tpu.concatenate %26, %27 in 0 : vector<2x128xf32>, vector<6x128xf32> -> vector<8x128xf32>
    %29 = vector.broadcast %24 : vector<1x128xf32> to vector<8x128xf32>
    %30 = arith.addf %29, %28 : vector<8x128xf32>
    %31 = vector.extract_strided_slice %23 {offsets = [0, 128], sizes = [8, 128], strides = [1, 1]} : vector<8x384xf32> to vector<8x128xf32>
    %32 = arith.addf %30, %31 : vector<8x128xf32>
    %33 = vector.extract_strided_slice %23 {offsets = [0, 256], sizes = [8, 128], strides = [1, 1]} : vector<8x384xf32> to vector<8x128xf32>
    %cst_19 = arith.constant 0.000000e+00 : f32
    %34 = vector.broadcast %cst_19 : f32 to vector<2x128xf32>
    %35 = vector.extract_strided_slice %33 {offsets = [2, 0], sizes = [6, 128], strides = [1, 1]} : vector<8x128xf32> to vector<6x128xf32>
    %36 = tpu.concatenate %35, %34 in 0 : vector<6x128xf32>, vector<2x128xf32> -> vector<8x128xf32>
    %37 = arith.addf %32, %36 : vector<8x128xf32>
    %cst_20 = arith.constant 0.000000e+00 : f32
    %38 = vector.broadcast %cst_20 : f32 to vector<8x128xf32>
    %39 = arith.cmpf oge, %37, %38 : vector<8x128xf32>
    %cst_21 = arith.constant 1.000000e-01 : f32
    %40 = vector.broadcast %cst_21 : f32 to vector<8x128xf32>
    %41 = arith.mulf %40, %37 : vector<8x128xf32>
    %42 = arith.select %39, %37, %41 : vector<8x128xi1>, vector<8x128xf32>
    %43 = arith.truncf %42 : vector<8x128xf32> to vector<8x128xbf16>
    %c0_22 = arith.constant 0 : index
    %c0_23 = arith.constant 0 : index
    %44 = vector.load %arg7[%c0_22, %c0_23] : memref<128x384xbf16, #tpu.memory_space<vmem>>, vector<128x384xbf16>
    %cst_24 = arith.constant dense<0.000000e+00> : vector<8x384xf32>
    %45 = tpu.matmul %43, %44, %cst_24 {dimension_numbers = #tpu.dot_dimension_numbers<[1], [0], [0], [1], [0, 0, 1, 1], [], []>} : vector<8x128xbf16>, vector<128x384xbf16>, vector<8x384xf32> -> vector<8x384xf32>
    %c0_25 = arith.constant 0 : index
    %c0_26 = arith.constant 0 : index
    %46 = vector.load %arg8[%c0_25, %c0_26] : memref<1x128xf32, #tpu.memory_space<vmem>>, vector<1x128xf32>
    %47 = vector.extract_strided_slice %45 {offsets = [0, 0], sizes = [8, 128], strides = [1, 1]} : vector<8x384xf32> to vector<8x128xf32>
    %cst_27 = arith.constant 0.000000e+00 : f32
    %48 = vector.broadcast %cst_27 : f32 to vector<2x128xf32>
    %49 = vector.extract_strided_slice %47 {offsets = [0, 0], sizes = [6, 128], strides = [1, 1]} : vector<8x128xf32> to vector<6x128xf32>
    %50 = tpu.concatenate %48, %49 in 0 : vector<2x128xf32>, vector<6x128xf32> -> vector<8x128xf32>
    %51 = vector.broadcast %46 : vector<1x128xf32> to vector<8x128xf32>
    %52 = arith.addf %51, %50 : vector<8x128xf32>
    %53 = vector.extract_strided_slice %45 {offsets = [0, 128], sizes = [8, 128], strides = [1, 1]} : vector<8x384xf32> to vector<8x128xf32>
    %54 = arith.addf %52, %53 : vector<8x128xf32>
    %55 = vector.extract_strided_slice %45 {offsets = [0, 256], sizes = [8, 128], strides = [1, 1]} : vector<8x384xf32> to vector<8x128xf32>
    %cst_28 = arith.constant 0.000000e+00 : f32
    %56 = vector.broadcast %cst_28 : f32 to vector<2x128xf32>
    %57 = vector.extract_strided_slice %55 {offsets = [2, 0], sizes = [6, 128], strides = [1, 1]} : vector<8x128xf32> to vector<6x128xf32>
    %58 = tpu.concatenate %57, %56 in 0 : vector<6x128xf32>, vector<2x128xf32> -> vector<8x128xf32>
    %59 = arith.addf %54, %58 : vector<8x128xf32>
    %cst_29 = arith.constant 0.000000e+00 : f32
    %60 = vector.broadcast %cst_29 : f32 to vector<8x128xf32>
    %61 = arith.cmpf oge, %59, %60 : vector<8x128xf32>
    %cst_30 = arith.constant 1.000000e-01 : f32
    %62 = vector.broadcast %cst_30 : f32 to vector<8x128xf32>
    %63 = arith.mulf %62, %59 : vector<8x128xf32>
    %64 = arith.select %61, %59, %63 : vector<8x128xi1>, vector<8x128xf32>
    %65 = arith.truncf %64 : vector<8x128xf32> to vector<8x128xbf16>
    %c0_31 = arith.constant 0 : index
    %c0_32 = arith.constant 0 : index
    %66 = vector.load %arg9[%c0_31, %c0_32] : memref<128x384xbf16, #tpu.memory_space<vmem>>, vector<128x384xbf16>
    %cst_33 = arith.constant dense<0.000000e+00> : vector<8x384xf32>
    %67 = tpu.matmul %65, %66, %cst_33 {dimension_numbers = #tpu.dot_dimension_numbers<[1], [0], [0], [1], [0, 0, 1, 1], [], []>} : vector<8x128xbf16>, vector<128x384xbf16>, vector<8x384xf32> -> vector<8x384xf32>
    %c0_34 = arith.constant 0 : index
    %c0_35 = arith.constant 0 : index
    %68 = vector.load %arg10[%c0_34, %c0_35] : memref<1x128xf32, #tpu.memory_space<vmem>>, vector<1x128xf32>
    %69 = vector.extract_strided_slice %67 {offsets = [0, 0], sizes = [8, 128], strides = [1, 1]} : vector<8x384xf32> to vector<8x128xf32>
    %cst_36 = arith.constant 0.000000e+00 : f32
    %70 = vector.broadcast %cst_36 : f32 to vector<2x128xf32>
    %71 = vector.extract_strided_slice %69 {offsets = [0, 0], sizes = [6, 128], strides = [1, 1]} : vector<8x128xf32> to vector<6x128xf32>
    %72 = tpu.concatenate %70, %71 in 0 : vector<2x128xf32>, vector<6x128xf32> -> vector<8x128xf32>
    %73 = vector.broadcast %68 : vector<1x128xf32> to vector<8x128xf32>
    %74 = arith.addf %73, %72 : vector<8x128xf32>
    %75 = vector.extract_strided_slice %67 {offsets = [0, 128], sizes = [8, 128], strides = [1, 1]} : vector<8x384xf32> to vector<8x128xf32>
    %76 = arith.addf %74, %75 : vector<8x128xf32>
    %77 = vector.extract_strided_slice %67 {offsets = [0, 256], sizes = [8, 128], strides = [1, 1]} : vector<8x384xf32> to vector<8x128xf32>
    %cst_37 = arith.constant 0.000000e+00 : f32
    %78 = vector.broadcast %cst_37 : f32 to vector<2x128xf32>
    %79 = vector.extract_strided_slice %77 {offsets = [2, 0], sizes = [6, 128], strides = [1, 1]} : vector<8x128xf32> to vector<6x128xf32>
    %80 = tpu.concatenate %79, %78 in 0 : vector<6x128xf32>, vector<2x128xf32> -> vector<8x128xf32>
    %81 = arith.addf %76, %80 : vector<8x128xf32>
    %cst_38 = arith.constant 0.000000e+00 : f32
    %82 = vector.broadcast %cst_38 : f32 to vector<8x128xf32>
    %83 = arith.cmpf oge, %81, %82 : vector<8x128xf32>
    %cst_39 = arith.constant 1.000000e-01 : f32
    %84 = vector.broadcast %cst_39 : f32 to vector<8x128xf32>
    %85 = arith.mulf %84, %81 : vector<8x128xf32>
    %86 = arith.select %83, %81, %85 : vector<8x128xi1>, vector<8x128xf32>
    %87 = vector.extract_strided_slice %86 {offsets = [0, 0], sizes = [2, 128], strides = [1, 1]} : vector<8x128xf32> to vector<2x128xf32>
    %88 = vector.extract_strided_slice %86 {offsets = [2, 0], sizes = [2, 128], strides = [1, 1]} : vector<8x128xf32> to vector<2x128xf32>
    %89 = vector.extract_strided_slice %86 {offsets = [4, 0], sizes = [2, 128], strides = [1, 1]} : vector<8x128xf32> to vector<2x128xf32>
    %90 = vector.extract_strided_slice %86 {offsets = [6, 0], sizes = [2, 128], strides = [1, 1]} : vector<8x128xf32> to vector<2x128xf32>
    %91 = tpu.concatenate %87, %88, %89, %90 in 1 : vector<2x128xf32>, vector<2x128xf32>, vector<2x128xf32>, vector<2x128xf32> -> vector<2x512xf32>
    %92 = arith.truncf %91 : vector<2x512xf32> to vector<2x512xbf16>
    %c0_40 = arith.constant 0 : index
    %c0_41 = arith.constant 0 : index
    %93 = vector.load %arg11[%c0_40, %c0_41] : memref<512x128xbf16, #tpu.memory_space<vmem>>, vector<512x128xbf16>
    %cst_42 = arith.constant dense<0.000000e+00> : vector<2x128xf32>
    %94 = tpu.matmul %92, %93, %cst_42 {dimension_numbers = #tpu.dot_dimension_numbers<[1], [0], [0], [1], [0, 0, 1, 1], [], []>} : vector<2x512xbf16>, vector<512x128xbf16>, vector<2x128xf32> -> vector<2x128xf32>
    %c0_43 = arith.constant 0 : index
    %c0_44 = arith.constant 0 : index
    %95 = vector.load %arg12[%c0_43, %c0_44] : memref<1x128xf32, #tpu.memory_space<vmem>>, vector<1x128xf32>
    %96 = vector.broadcast %95 : vector<1x128xf32> to vector<2x128xf32>
    %97 = arith.addf %94, %96 : vector<2x128xf32>
    %cst_45 = arith.constant 0.000000e+00 : f32
    %98 = vector.broadcast %cst_45 : f32 to vector<2x128xf32>
    %99 = arith.cmpf oge, %97, %98 : vector<2x128xf32>
    %cst_46 = arith.constant 1.000000e-01 : f32
    %100 = vector.broadcast %cst_46 : f32 to vector<2x128xf32>
    %101 = arith.mulf %100, %97 : vector<2x128xf32>
    %102 = arith.select %99, %97, %101 : vector<2x128xi1>, vector<2x128xf32>
    %103 = arith.truncf %102 : vector<2x128xf32> to vector<2x128xbf16>
    %c0_47 = arith.constant 0 : index
    %c0_48 = arith.constant 0 : index
    %104 = vector.load %arg13[%c0_47, %c0_48] : memref<128x256xbf16, #tpu.memory_space<vmem>>, vector<128x256xbf16>
    %cst_49 = arith.constant dense<0.000000e+00> : vector<2x256xf32>
    %105 = tpu.matmul %103, %104, %cst_49 {dimension_numbers = #tpu.dot_dimension_numbers<[1], [0], [0], [1], [0, 0, 1, 1], [], []>} : vector<2x128xbf16>, vector<128x256xbf16>, vector<2x256xf32> -> vector<2x256xf32>
    %c0_50 = arith.constant 0 : index
    %c0_51 = arith.constant 0 : index
    %106 = vector.load %arg14[%c0_50, %c0_51] : memref<1x256xf32, #tpu.memory_space<vmem>>, vector<1x256xf32>
    %107 = vector.broadcast %106 : vector<1x256xf32> to vector<2x256xf32>
    %108 = arith.addf %105, %107 : vector<2x256xf32>
    %c0_52 = arith.constant 0 : index
    %c0_53 = arith.constant 0 : index
    %109 = vector.load %arg15[%c0_52, %c0_53] : memref<2x256xf32, #tpu.memory_space<vmem>>, vector<2x256xf32>
    tpu.vector_store %arg15[%c0_52, %c0_53], %108 {strides = array<i32>} : memref<2x256xf32, #tpu.memory_space<vmem>>, vector<2x256xf32>,
    return
  }
}

</mosaic_0001>

<llo_original>
// kernel: yolo_forward.1
$region0: #{yolo_forward.1}
  #allocation0 [shape = 'u32[]', space=smem, size = 0x4, offset = 0x4, fixed_abs, tag = 'smem constant byte address 0x4 - core index']
  #allocation1 [shape = 'u32[144,128]{1,0:T(1,128)}', space=vmem, size = 0x12000, scoped, tag = 'internal scratch']
  %s0 = inlined_call_operand.vmem [shape: bf16[8,256], index: 0, kind: input, shape index: {}]
  %s1 = inlined_call_operand.vmem [shape: bf16[8,256], index: 1, kind: input, shape index: {}]
  %s2 = inlined_call_operand.hbm [shape: bf16[256,128], index: 2, kind: input, shape index: {}]
  %s3 = inlined_call_operand.vmem [shape: bf16[256,256], index: 3, kind: input, shape index: {}]
  %s4 = inlined_call_operand.vmem [shape: f32[1,128], index: 4, kind: input, shape index: {}]
  %s5 = inlined_call_operand.hbm [shape: bf16[128,384], index: 5, kind: input, shape index: {}]
  %s6 = inlined_call_operand.vmem [shape: f32[1,128], index: 6, kind: input, shape index: {}]
  %s7 = inlined_call_operand.hbm [shape: bf16[128,384], index: 7, kind: input, shape index: {}]
  %s8 = inlined_call_operand.vmem [shape: f32[1,128], index: 8, kind: input, shape index: {}]
  %s9 = inlined_call_operand.hbm [shape: bf16[128,384], index: 9, kind: input, shape index: {}]
  %s10 = inlined_call_operand.vmem [shape: f32[1,128], index: 10, kind: input, shape index: {}]
  %s11 = inlined_call_operand.vmem [shape: bf16[512,128], index: 11, kind: input, shape index: {}]
  %s12 = inlined_call_operand.vmem [shape: f32[1,128], index: 12, kind: input, shape index: {}]
  %s13 = inlined_call_operand.hbm [shape: bf16[128,256], index: 13, kind: input, shape index: {}]
  %s14 = inlined_call_operand.vmem [shape: f32[1,256], index: 14, kind: input, shape index: {}]
  %s15 = inlined_call_operand.vmem [shape: f32[2,256], index: 15, kind: output, shape index: {}]
  %s16 = sld [smem:[#allocation0]]
  $region90: #{yolo_forward.1} parent=0
    _
  %s18 = ssub.s32 1, %s16
  %s19 = scalar_select 0, %s18, %s16
  $region1: #{yolo_forward.1} parent=0
    #allocation2 [shape = 'u8[65536]{0}', space=vmem, size = 0x10000, scoped, tag = 'input window, operand 2, single buffered']
    #allocation3 [shape = 's32[1]{0}', space=sflag, size = 0x4, scoped, tag = 'scoped memory for yolo_forward.1']
    #allocation4 [shape = 'u8[98304]{0}', space=vmem, size = 0x18000, scoped, tag = 'input window, operand 5, single buffered']
    #allocation5 [shape = 's32[1]{0}', space=sflag, size = 0x4, scoped, tag = 'scoped memory for yolo_forward.1']
    #allocation6 [shape = 'u8[98304]{0}', space=vmem, size = 0x18000, scoped, tag = 'input window, operand 7, single buffered']
    #allocation7 [shape = 'u8[98304]{0}', space=vmem, size = 0x18000, scoped, tag = 'input window, operand 9, single buffered']
    #allocation8 [shape = 's32[1]{0}', space=sflag, size = 0x4, scoped, tag = 'scoped memory for yolo_forward.1']
    #allocation9 [shape = 'u8[65536]{0}', space=vmem, size = 0x10000, scoped, tag = 'input window, operand 13, single buffered']
    %20 = vsyncpa [#allocation3], 0
    %21 = vsyncpa [#allocation5], 0
    %22 = vsyncpa [#allocation8], 0
    // Predicated region
    $region2: #{yolo_forward.1} parent=1 // pred_check
      _
    $region3: #{yolo_forward.1} parent=1 // pred_check_branch
      %24 = sbr.rel (0) target = $region5
    $region4: #{yolo_forward.1} parent=1 // pred_region
      _
    $region5: #{yolo_forward.1} parent=1 // pred_fallthru
      _
    // Predicated region
    $region6: #{yolo_forward.1} parent=1 // pred_check
      _
    $region7: #{yolo_forward.1} parent=1 // pred_check_branch
      %26 = sbr.rel (0) target = $region9
    $region8: #{yolo_forward.1} parent=1 // pred_region
      _
    $region9: #{yolo_forward.1} parent=1 // pred_fallthru
      _
    // Predicated region
    $region10: #{yolo_forward.1} parent=1 // pred_check
      _
    $region11: #{yolo_forward.1} parent=1 // pred_check_branch
      %28 = sbr.rel (0) target = $region13
    $region12: #{yolo_forward.1} parent=1 // pred_region
      %s30 = ssub.s32 2048, 2048
      %31 = vsyncadd [#allocation3], %s30
      %s32 = sshll.u32 [#allocation2], 4
      %s33 = int_to_ptr.vmem [resolvable:$true] %s32
      %38 = dma.hbm_to_vmem [thread:$0]  %s2, 2048, %s33, [#allocation3], 64, 64, 4
    $region13: #{yolo_forward.1} parent=1 // pred_fallthru
      _
    // Predicated region
    $region14: #{yolo_forward.1} parent=1 // pred_check
      _
    $region15: #{yolo_forward.1} parent=1 // pred_check_branch
      %40 = sbr.rel (0) target = $region17
    $region16: #{yolo_forward.1} parent=1 // pred_region
      _
    $region17: #{yolo_forward.1} parent=1 // pred_fallthru
      _
    // Predicated region
    $region18: #{yolo_forward.1} parent=1 // pred_check
      _
    $region19: #{yolo_forward.1} parent=1 // pred_check_branch
      %42 = sbr.rel (0) target = $region21
    $region20: #{yolo_forward.1} parent=1 // pred_region
      _
    $region21: #{yolo_forward.1} parent=1 // pred_fallthru
      _
    // Predicated region
    $region22: #{yolo_forward.1} parent=1 // pred_check
      _
    $region23: #{yolo_forward.1} parent=1 // pred_check_branch
      %44 = sbr.rel (0) target = $region25
    $region24: #{yolo_forward.1} parent=1 // pred_region
      %s46 = ssub.s32 3072, 3072
      %47 = vsyncadd [#allocation5], %s46
      %s48 = sshll.u32 [#allocation4], 4
      %s49 = int_to_ptr.vmem [resolvable:$true] %s48
      %54 = dma.hbm_to_vmem [thread:$0]  %s5, 3072, %s49, [#allocation5], 192, 192, 12
    $region25: #{yolo_forward.1} parent=1 // pred_fallthru
      _
    // Predicated region
    $region26: #{yolo_forward.1} parent=1 // pred_check
      _
    $region27: #{yolo_forward.1} parent=1 // pred_check_branch
      %56 = sbr.rel (0) target = $region29
    $region28: #{yolo_forward.1} parent=1 // pred_region
      _
    $region29: #{yolo_forward.1} parent=1 // pred_fallthru
      _
    // Predicated region
    $region30: #{yolo_forward.1} parent=1 // pred_check
      _
    $region31: #{yolo_forward.1} parent=1 // pred_check_branch
      %58 = sbr.rel (0) target = $region33
    $region32: #{yolo_forward.1} parent=1 // pred_region
      %s60 = ssub.s32 3072, 3072
      %61 = vsyncadd [#allocation5], %s60
      %s62 = sshll.u32 [#allocation6], 4
      %s63 = int_to_ptr.vmem [resolvable:$true] %s62
      %68 = dma.hbm_to_vmem [thread:$0]  %s7, 3072, %s63, [#allocation5], 192, 192, 12
    $region33: #{yolo_forward.1} parent=1 // pred_fallthru
      _
    // Predicated region
    $region34: #{yolo_forward.1} parent=1 // pred_check
      _
    $region35: #{yolo_forward.1} parent=1 // pred_check_branch
      %70 = sbr.rel (0) target = $region37
    $region36: #{yolo_forward.1} parent=1 // pred_region
      _
    $region37: #{yolo_forward.1} parent=1 // pred_fallthru
      _
    // Predicated region
    $region38: #{yolo_forward.1} parent=1 // pred_check
      _
    $region39: #{yolo_forward.1} parent=1 // pred_check_branch
      %72 = sbr.rel (0) target = $region41
    $region40: #{yolo_forward.1} parent=1 // pred_region
      %s74 = ssub.s32 3072, 3072
      %75 = vsyncadd [#allocation8], %s74
      %s76 = sshll.u32 [#allocation7], 4
      %s77 = int_to_ptr.vmem [resolvable:$true] %s76
      %82 = dma.hbm_to_vmem [thread:$0]  %s9, 3072, %s77, [#allocation8], 192, 192, 12
    $region41: #{yolo_forward.1} parent=1 // pred_fallthru
      _
    // Predicated region
    $region42: #{yolo_forward.1} parent=1 // pred_check
      _
    $region43: #{yolo_forward.1} parent=1 // pred_check_branch
      %84 = sbr.rel (0) target = $region45
    $region44: #{yolo_forward.1} parent=1 // pred_region
      _
    $region45: #{yolo_forward.1} parent=1 // pred_fallthru
      _
    // Predicated region
    $region46: #{yolo_forward.1} parent=1 // pred_check
      _
    $region47: #{yolo_forward.1} parent=1 // pred_check_branch
      %86 = sbr.rel (0) target = $region49
    $region48: #{yolo_forward.1} parent=1 // pred_region
      _
    $region49: #{yolo_forward.1} parent=1 // pred_fallthru
      _
    // Predicated region
    $region50: #{yolo_forward.1} parent=1 // pred_check
      _
    $region51: #{yolo_forward.1} parent=1 // pred_check_branch
      %88 = sbr.rel (0) target = $region53
    $region52: #{yolo_forward.1} parent=1 // pred_region
      _
    $region53: #{yolo_forward.1} parent=1 // pred_fallthru
      _
    // Predicated region
    $region54: #{yolo_forward.1} parent=1 // pred_check
      _
    $region55: #{yolo_forward.1} parent=1 // pred_check_branch
      %90 = sbr.rel (0) target = $region57
    $region56: #{yolo_forward.1} parent=1 // pred_region
      %s92 = ssub.s32 2048, 2048
      %93 = vsyncadd [#allocation8], %s92
      %s94 = sshll.u32 [#allocation9], 4
      %s95 = int_to_ptr.vmem [resolvable:$true] %s94
      %100 = dma.hbm_to_vmem [thread:$0]  %s13, 2048, %s95, [#allocation8], 128, 128, 8
    $region57: #{yolo_forward.1} parent=1 // pred_fallthru
      _
    // Predicated region
    $region58: #{yolo_forward.1} parent=1 // pred_check
      _
    $region59: #{yolo_forward.1} parent=1 // pred_check_branch
      %102 = sbr.rel (0) target = $region61
    $region60: #{yolo_forward.1} parent=1 // pred_region
      _
    $region61: #{yolo_forward.1} parent=1 // pred_fallthru
      _
    // Predicated region
    $region62: #{yolo_forward.1} parent=1 // pred_check
      _
    $region63: #{yolo_forward.1} parent=1 // pred_check_branch
      %104 = sbr.rel (0) target = $region65
    $region64: #{yolo_forward.1} parent=1 // pred_region
      %105 = dma.done [#allocation3], 2048
    $region65: #{yolo_forward.1} parent=1 // pred_fallthru
      _
    // Predicated region
    $region66: #{yolo_forward.1} parent=1 // pred_check
      _
    $region67: #{yolo_forward.1} parent=1 // pred_check_branch
      %107 = sbr.rel (0) target = $region69
    $region68: #{yolo_forward.1} parent=1 // pred_region
      %108 = dma.done [#allocation5], 3072
    $region69: #{yolo_forward.1} parent=1 // pred_fallthru
      _
    // Predicated region
    $region70: #{yolo_forward.1} parent=1 // pred_check
      _
    $region71: #{yolo_forward.1} parent=1 // pred_check_branch
      %110 = sbr.rel (0) target = $region73
    $region72: #{yolo_forward.1} parent=1 // pred_region
      %111 = dma.done [#allocation5], 3072
    $region73: #{yolo_forward.1} parent=1 // pred_fallthru
      _
    // Predicated region
    $region74: #{yolo_forward.1} parent=1 // pred_check
      _
    $region75: #{yolo_forward.1} parent=1 // pred_check_branch
      %113 = sbr.rel (0) target = $region77
    $region76: #{yolo_forward.1} parent=1 // pred_region
      %114 = dma.done [#allocation8], 3072
    $region77: #{yolo_forward.1} parent=1 // pred_fallthru
      _
    // Predicated region
    $region78: #{yolo_forward.1} parent=1 // pred_check
      _
    $region79: #{yolo_forward.1} parent=1 // pred_check_branch
      %116 = sbr.rel (0) target = $region81
    $region80: #{yolo_forward.1} parent=1 // pred_region
      %117 = dma.done [#allocation8], 2048
    $region81: #{yolo_forward.1} parent=1 // pred_fallthru
      _
    %v119 = vld [vmem:[%s0] sm:$0xff]
    %v120 = vld [vmem:[#allocation2] sm:$0xf]
    %v121 = vld [vmem:[#allocation2 + $0x4] sm:$0xf]
    %v122 = vld [vmem:[#allocation2 + $0x8] sm:$0xf]
    %v123 = vld [vmem:[#allocation2 + $0xc] sm:$0xf]
    %v124 = vld [vmem:[#allocation2 + $0x10] sm:$0xf]
    %v125 = vld [vmem:[#allocation2 + $0x14] sm:$0xf]
    %v126 = vld [vmem:[#allocation2 + $0x18] sm:$0xf]
    %v127 = vld [vmem:[#allocation2 + $0x1c] sm:$0xf]
    %v128 = vld [vmem:[#allocation2 + $0x20] sm:$0xf]
    %v129 = vld [vmem:[#allocation2 + $0x24] sm:$0xf]
    %v130 = vld [vmem:[#allocation2 + $0x28] sm:$0xf]
    %v131 = vld [vmem:[#allocation2 + $0x2c] sm:$0xf]
    %v132 = vld [vmem:[#allocation2 + $0x30] sm:$0xf]
    %v133 = vld [vmem:[#allocation2 + $0x34] sm:$0xf]
    %v134 = vld [vmem:[#allocation2 + $0x38] sm:$0xf]
    %v135 = vld [vmem:[#allocation2 + $0x3c] sm:$0xf]
    %v136 = vld [vmem:[#allocation2 + $0x40] sm:$0xf]
    %v137 = vld [vmem:[#allocation2 + $0x44] sm:$0xf]
    %v138 = vld [vmem:[#allocation2 + $0x48] sm:$0xf]
    %v139 = vld [vmem:[#allocation2 + $0x4c] sm:$0xf]
    %v140 = vld [vmem:[#allocation2 + $0x50] sm:$0xf]
    %v141 = vld [vmem:[#allocation2 + $0x54] sm:$0xf]
    %v142 = vld [vmem:[#allocation2 + $0x58] sm:$0xf]
    %v143 = vld [vmem:[#allocation2 + $0x5c] sm:$0xf]
    %v144 = vld [vmem:[#allocation2 + $0x60] sm:$0xf]
    %v145 = vld [vmem:[#allocation2 + $0x64] sm:$0xf]
    %v146 = vld [vmem:[#allocation2 + $0x68] sm:$0xf]
    %v147 = vld [vmem:[#allocation2 + $0x6c] sm:$0xf]
    %v148 = vld [vmem:[#allocation2 + $0x70] sm:$0xf]
    %v149 = vld [vmem:[#allocation2 + $0x74] sm:$0xf]
    %v150 = vld [vmem:[#allocation2 + $0x78] sm:$0xf]
    %v151 = vld [vmem:[#allocation2 + $0x7c] sm:$0xf]
    %v153 = vunpack.c.l.b16 %v119
    %v154 = vunpack.c.h.b16 %v119
    %v155 = vpack.c.b16 %v153, %v153
    %v156 = vpack.c.b16 %v154, %v154
    %v191 = vunpack.c.l.b16 %v120
    %v192 = vunpack.c.l.b16 %v121
    %v193 = vunpack.c.l.b16 %v122
    %v194 = vunpack.c.l.b16 %v123
    %v195 = vunpack.c.l.b16 %v124
    %v196 = vunpack.c.l.b16 %v125
    %v197 = vunpack.c.l.b16 %v126
    %v198 = vunpack.c.l.b16 %v127
    %v199 = vunpack.c.l.b16 %v128
    %v200 = vunpack.c.l.b16 %v129
    %v201 = vunpack.c.l.b16 %v130
    %v202 = vunpack.c.l.b16 %v131
    %v203 = vunpack.c.l.b16 %v132
    %v204 = vunpack.c.l.b16 %v133
    %v205 = vunpack.c.l.b16 %v134
    %v206 = vunpack.c.l.b16 %v135
    %v207 = vunpack.c.l.b16 %v136
    %v208 = vunpack.c.l.b16 %v137
    %v209 = vunpack.c.l.b16 %v138
    %v210 = vunpack.c.l.b16 %v139
    %v211 = vunpack.c.l.b16 %v140
    %v212 = vunpack.c.l.b16 %v141
    %v213 = vunpack.c.l.b16 %v142
    %v214 = vunpack.c.l.b16 %v143
    %v215 = vunpack.c.l.b16 %v144
    %v216 = vunpack.c.l.b16 %v145
    %v217 = vunpack.c.l.b16 %v146
    %v218 = vunpack.c.l.b16 %v147
    %v219 = vunpack.c.l.b16 %v148
    %v220 = vunpack.c.l.b16 %v149
    %v221 = vunpack.c.l.b16 %v150
    %v222 = vunpack.c.l.b16 %v151
    %v223 = vpack.c.b16 %v192, %v191
    %v224 = vpack.c.b16 %v194, %v193
    %v225 = vpack.c.b16 %v196, %v195
    %v226 = vpack.c.b16 %v198, %v197
    %v227 = vpack.c.b16 %v200, %v199
    %v228 = vpack.c.b16 %v202, %v201
    %v229 = vpack.c.b16 %v204, %v203
    %v230 = vpack.c.b16 %v206, %v205
    %v231 = vpack.c.b16 %v208, %v207
    %v232 = vpack.c.b16 %v210, %v209
    %v233 = vpack.c.b16 %v212, %v211
    %v234 = vpack.c.b16 %v214, %v213
    %v235 = vpack.c.b16 %v216, %v215
    %v236 = vpack.c.b16 %v218, %v217
    %v237 = vpack.c.b16 %v220, %v219
    %v238 = vpack.c.b16 %v222, %v221
    %255 = vmatprep.subr.bf16.mxu0 0
    %256 = vmatpush1.bf16.msra.mxu0 %v223
    %257 = vmatprep.subr.bf16.mxu0 0
    %258 = vmatpush1.bf16.msra.mxu0 %v224
    %259 = vmatprep.subr.bf16.mxu0 0
    %260 = vmatpush1.bf16.msra.mxu0 %v225
    %261 = vmatprep.subr.bf16.mxu0 0
    %262 = vmatpush1.bf16.msra.mxu0 %v226
    %263 = vmatprep.subr.bf16.mxu0 0
    %264 = vmatpush1.bf16.msra.mxu0 %v227
    %265 = vmatprep.subr.bf16.mxu0 0
    %266 = vmatpush1.bf16.msra.mxu0 %v228
    %267 = vmatprep.subr.bf16.mxu0 0
    %268 = vmatpush1.bf16.msra.mxu0 %v229
    %269 = vmatprep.subr.bf16.mxu0 0
    %270 = vmatpush1.bf16.msra.mxu0 %v230
    %271 = vmatprep.subr.bf16.mxu0 0
    %272 = vmatpush1.bf16.msra.mxu0 %v231
    %273 = vmatprep.subr.bf16.mxu0 0
    %274 = vmatpush1.bf16.msra.mxu0 %v232
    %275 = vmatprep.subr.bf16.mxu0 0
    %276 = vmatpush1.bf16.msra.mxu0 %v233
    %277 = vmatprep.subr.bf16.mxu0 0
    %278 = vmatpush1.bf16.msra.mxu0 %v234
    %279 = vmatprep.subr.bf16.mxu0 0
    %280 = vmatpush1.bf16.msra.mxu0 %v235
    %281 = vmatprep.subr.bf16.mxu0 0
    %282 = vmatpush1.bf16.msra.mxu0 %v236
    %283 = vmatprep.subr.bf16.mxu0 0
    %284 = vmatpush1.bf16.msra.mxu0 %v237
    %285 = vmatprep.subr.bf16.mxu0 0
    %286 = vmatpush1.bf16.msra.mxu0 %v238
    %287 = vmatprep.mubr.bf16.mxu0 %v156
    %288 = vmatmul.mubr.bf16.gmra.mrb[0].mxu0 %v155
    %v289 = vpop.f32.mrb[0].mxu0
    %v290 = vadd.f32 0.0, %v289
    %v291 = vpop.f32.mrb[0].mxu0
    %v292 = vpop.f32.mrb[0].mxu0
    %v293 = vpop.f32.mrb[0].mxu0
    %294 = vdwg.mxu0
    %v295 = vld [vmem:[%s1] sm:$0xff]
    %v296 = vld [vmem:[%s3] sm:$0xff]
    %v297 = vld [vmem:[%s3 + $0x8] sm:$0xff]
    %v298 = vld [vmem:[%s3 + $0x10] sm:$0xff]
    %v299 = vld [vmem:[%s3 + $0x18] sm:$0xff]
    %v300 = vld [vmem:[%s3 + $0x20] sm:$0xff]
    %v301 = vld [vmem:[%s3 + $0x28] sm:$0xff]
    %v302 = vld [vmem:[%s3 + $0x30] sm:$0xff]
    %v303 = vld [vmem:[%s3 + $0x38] sm:$0xff]
    %v304 = vld [vmem:[%s3 + $0x40] sm:$0xff]
    %v305 = vld [vmem:[%s3 + $0x48] sm:$0xff]
    %v306 = vld [vmem:[%s3 + $0x50] sm:$0xff]
    %v307 = vld [vmem:[%s3 + $0x58] sm:$0xff]
    %v308 = vld [vmem:[%s3 + $0x60] sm:$0xff]
    %v309 = vld [vmem:[%s3 + $0x68] sm:$0xff]
    %v310 = vld [vmem:[%s3 + $0x70] sm:$0xff]
    %v311 = vld [vmem:[%s3 + $0x78] sm:$0xff]
    %v312 = vld [vmem:[%s3 + $0x80] sm:$0xff]
    %v313 = vld [vmem:[%s3 + $0x88] sm:$0xff]
    %v314 = vld [vmem:[%s3 + $0x90] sm:$0xff]
    %v315 = vld [vmem:[%s3 + $0x98] sm:$0xff]
    %v316 = vld [vmem:[%s3 + $0xa0] sm:$0xff]
    %v317 = vld [vmem:[%s3 + $0xa8] sm:$0xff]
    %v318 = vld [vmem:[%s3 + $0xb0] sm:$0xff]
    %v319 = vld [vmem:[%s3 + $0xb8] sm:$0xff]
    %v320 = vld [vmem:[%s3 + $0xc0] sm:$0xff]
    %v321 = vld [vmem:[%s3 + $0xc8] sm:$0xff]
    %v322 = vld [vmem:[%s3 + $0xd0] sm:$0xff]
    %v323 = vld [vmem:[%s3 + $0xd8] sm:$0xff]
    %v324 = vld [vmem:[%s3 + $0xe0] sm:$0xff]
    %v325 = vld [vmem:[%s3 + $0xe8] sm:$0xff]
    %v326 = vld [vmem:[%s3 + $0xf0] sm:$0xff]
    %v327 = vld [vmem:[%s3 + $0xf8] sm:$0xff]
    %v329 = vunpack.c.l.b16 %v295
    %v330 = vunpack.c.h.b16 %v295
    %v331 = vpack.c.b16 %v329, %v329
    %v332 = vpack.c.b16 %v330, %v330
    %v367 = vunpack.c.l.b16 %v296
    %v368 = vunpack.c.h.b16 %v296
    %v369 = vunpack.c.l.b16 %v297
    %v370 = vunpack.c.h.b16 %v297
    %v371 = vunpack.c.l.b16 %v298
    %v372 = vunpack.c.h.b16 %v298
    %v373 = vunpack.c.l.b16 %v299
    %v374 = vunpack.c.h.b16 %v299
    %v375 = vunpack.c.l.b16 %v300
    %v376 = vunpack.c.h.b16 %v300
    %v377 = vunpack.c.l.b16 %v301
    %v378 = vunpack.c.h.b16 %v301
    %v379 = vunpack.c.l.b16 %v302
    %v380 = vunpack.c.h.b16 %v302
    %v381 = vunpack.c.l.b16 %v303
    %v382 = vunpack.c.h.b16 %v303
    %v383 = vunpack.c.l.b16 %v304
    %v384 = vunpack.c.h.b16 %v304
    %v385 = vunpack.c.l.b16 %v305
    %v386 = vunpack.c.h.b16 %v305
    %v387 = vunpack.c.l.b16 %v306
    %v388 = vunpack.c.h.b16 %v306
    %v389 = vunpack.c.l.b16 %v307
    %v390 = vunpack.c.h.b16 %v307
    %v391 = vunpack.c.l.b16 %v308
    %v392 = vunpack.c.h.b16 %v308
    %v393 = vunpack.c.l.b16 %v309
    %v394 = vunpack.c.h.b16 %v309
    %v395 = vunpack.c.l.b16 %v310
    %v396 = vunpack.c.h.b16 %v310
    %v397 = vunpack.c.l.b16 %v311
    %v398 = vunpack.c.h.b16 %v311
    %v399 = vunpack.c.l.b16 %v312
    %v400 = vunpack.c.h.b16 %v312
    %v401 = vunpack.c.l.b16 %v313
    %v402 = vunpack.c.h.b16 %v313
    %v403 = vunpack.c.l.b16 %v314
    %v404 = vunpack.c.h.b16 %v314
    %v405 = vunpack.c.l.b16 %v315
    %v406 = vunpack.c.h.b16 %v315
    %v407 = vunpack.c.l.b16 %v316
    %v408 = vunpack.c.h.b16 %v316
    %v409 = vunpack.c.l.b16 %v317
    %v410 = vunpack.c.h.b16 %v317
    %v411 = vunpack.c.l.b16 %v318
    %v412 = vunpack.c.h.b16 %v318
    %v413 = vunpack.c.l.b16 %v319
    %v414 = vunpack.c.h.b16 %v319
    %v415 = vunpack.c.l.b16 %v320
    %v416 = vunpack.c.h.b16 %v320
    %v417 = vunpack.c.l.b16 %v321
    %v418 = vunpack.c.h.b16 %v321
    %v419 = vunpack.c.l.b16 %v322
    %v420 = vunpack.c.h.b16 %v322
    %v421 = vunpack.c.l.b16 %v323
    %v422 = vunpack.c.h.b16 %v323
    %v423 = vunpack.c.l.b16 %v324
    %v424 = vunpack.c.h.b16 %v324
    %v425 = vunpack.c.l.b16 %v325
    %v426 = vunpack.c.h.b16 %v325
    %v427 = vunpack.c.l.b16 %v326
    %v428 = vunpack.c.h.b16 %v326
    %v429 = vunpack.c.l.b16 %v327
    %v430 = vunpack.c.h.b16 %v327
    %v431 = vpack.c.b16 %v369, %v367
    %v432 = vpack.c.b16 %v370, %v368
    %v433 = vpack.c.b16 %v373, %v371
    %v434 = vpack.c.b16 %v374, %v372
    %v435 = vpack.c.b16 %v377, %v375
    %v436 = vpack.c.b16 %v378, %v376
    %v437 = vpack.c.b16 %v381, %v379
    %v438 = vpack.c.b16 %v382, %v380
    %v439 = vpack.c.b16 %v385, %v383
    %v440 = vpack.c.b16 %v386, %v384
    %v441 = vpack.c.b16 %v389, %v387
    %v442 = vpack.c.b16 %v390, %v388
    %v443 = vpack.c.b16 %v393, %v391
    %v444 = vpack.c.b16 %v394, %v392
    %v445 = vpack.c.b16 %v397, %v395
    %v446 = vpack.c.b16 %v398, %v396
    %v447 = vpack.c.b16 %v401, %v399
    %v448 = vpack.c.b16 %v402, %v400
    %v449 = vpack.c.b16 %v405, %v403
    %v450 = vpack.c.b16 %v406, %v404
    %v451 = vpack.c.b16 %v409, %v407
    %v452 = vpack.c.b16 %v410, %v408
    %v453 = vpack.c.b16 %v413, %v411
    %v454 = vpack.c.b16 %v414, %v412
    %v455 = vpack.c.b16 %v417, %v415
    %v456 = vpack.c.b16 %v418, %v416
    %v457 = vpack.c.b16 %v421, %v419
    %v458 = vpack.c.b16 %v422, %v420
    %v459 = vpack.c.b16 %v425, %v423
    %v460 = vpack.c.b16 %v426, %v424
    %v461 = vpack.c.b16 %v429, %v427
    %v462 = vpack.c.b16 %v430, %v428
    %495 = vmatprep.subr.bf16.mxu0 %v432
    %496 = vmatpush1.bf16.msra.mxu0 %v431
    %497 = vmatprep.subr.bf16.mxu0 %v434
    %498 = vmatpush1.bf16.msra.mxu0 %v433
    %499 = vmatprep.subr.bf16.mxu0 %v436
    %500 = vmatpush1.bf16.msra.mxu0 %v435
    %501 = vmatprep.subr.bf16.mxu0 %v438
    %502 = vmatpush1.bf16.msra.mxu0 %v437
    %503 = vmatprep.subr.bf16.mxu0 %v440
    %504 = vmatpush1.bf16.msra.mxu0 %v439
    %505 = vmatprep.subr.bf16.mxu0 %v442
    %506 = vmatpush1.bf16.msra.mxu0 %v441
    %507 = vmatprep.subr.bf16.mxu0 %v444
    %508 = vmatpush1.bf16.msra.mxu0 %v443
    %509 = vmatprep.subr.bf16.mxu0 %v446
    %510 = vmatpush1.bf16.msra.mxu0 %v445
    %511 = vmatprep.subr.bf16.mxu0 %v448
    %512 = vmatpush1.bf16.msra.mxu0 %v447
    %513 = vmatprep.subr.bf16.mxu0 %v450
    %514 = vmatpush1.bf16.msra.mxu0 %v449
    %515 = vmatprep.subr.bf16.mxu0 %v452
    %516 = vmatpush1.bf16.msra.mxu0 %v451
    %517 = vmatprep.subr.bf16.mxu0 %v454
    %518 = vmatpush1.bf16.msra.mxu0 %v453
    %519 = vmatprep.subr.bf16.mxu0 %v456
    %520 = vmatpush1.bf16.msra.mxu0 %v455
    %521 = vmatprep.subr.bf16.mxu0 %v458
    %522 = vmatpush1.bf16.msra.mxu0 %v457
    %523 = vmatprep.subr.bf16.mxu0 %v460
    %524 = vmatpush1.bf16.msra.mxu0 %v459
    %525 = vmatprep.subr.bf16.mxu0 %v462
    %526 = vmatpush1.bf16.msra.mxu0 %v461
    %527 = vmatprep.mubr.bf16.mxu0 %v332
    %528 = vmatmul.mubr.bf16.gmra.mrb[0].mxu0 %v331
    %v529 = vpop.f32.mrb[0].mxu0
    %v530 = vadd.f32 0.0, %v529
    %v531 = vpop.f32.mrb[0].mxu0
    %v532 = vadd.f32 0.0, %v531
    %v533 = vpop.f32.mrb[0].mxu0
    %v534 = vpop.f32.mrb[0].mxu0
    %535 = vdwg.mxu0
    %v536 = vld [vmem:[%s4] sm:$0x1]
    %v538 = vlaneseq
    %v539 = vshrl.u32 %v538, 7
    %v540 = vsub.s32 0, %v539
    %v541 = vrot.slane %v536, %v540
    %v543 = vadd.f32 %v541, %v290
    %v545 = vrot.slane %v530, 6
    %vm547 = vcmask 1041408
    %v548 = vsel %vm547, 0.0, %v545
    %v549 = vadd.f32 %v543, %v548
    %v550 = vadd.f32 %v549, %v532
    %vm551 = vcmp.ge.f32.partialorder %v550, 0.0
    %v552 = vmul.f32 %v550, 0.1
    %v553 = vsel %vm551, %v550, %v552
    %v554 = vpack.c.bf16 %v553, %v553
    %v555 = vld [vmem:[#allocation4] sm:$0xff]
    %v556 = vld [vmem:[#allocation4 + $0x8] sm:$0xf]
    %v557 = vld [vmem:[#allocation4 + $0xc] sm:$0xff]
    %v558 = vld [vmem:[#allocation4 + $0x14] sm:$0xf]
    %v559 = vld [vmem:[#allocation4 + $0x18] sm:$0xff]
    %v560 = vld [vmem:[#allocation4 + $0x20] sm:$0xf]
    %v561 = vld [vmem:[#allocation4 + $0x24] sm:$0xff]
    %v562 = vld [vmem:[#allocation4 + $0x2c] sm:$0xf]
    %v563 = vld [vmem:[#allocation4 + $0x30] sm:$0xff]
    %v564 = vld [vmem:[#allocation4 + $0x38] sm:$0xf]
    %v565 = vld [vmem:[#allocation4 + $0x3c] sm:$0xff]
    %v566 = vld [vmem:[#allocation4 + $0x44] sm:$0xf]
    %v567 = vld [vmem:[#allocation4 + $0x48] sm:$0xff]
    %v568 = vld [vmem:[#allocation4 + $0x50] sm:$0xf]
    %v569 = vld [vmem:[#allocation4 + $0x54] sm:$0xff]
    %v570 = vld [vmem:[#allocation4 + $0x5c] sm:$0xf]
    %v571 = vld [vmem:[#allocation4 + $0x60] sm:$0xff]
    %v572 = vld [vmem:[#allocation4 + $0x68] sm:$0xf]
    %v573 = vld [vmem:[#allocation4 + $0x6c] sm:$0xff]
    %v574 = vld [vmem:[#allocation4 + $0x74] sm:$0xf]
    %v575 = vld [vmem:[#allocation4 + $0x78] sm:$0xff]
    %v576 = vld [vmem:[#allocation4 + $0x80] sm:$0xf]
    %v577 = vld [vmem:[#allocation4 + $0x84] sm:$0xff]
    %v578 = vld [vmem:[#allocation4 + $0x8c] sm:$0xf]
    %v579 = vld [vmem:[#allocation4 + $0x90] sm:$0xff]
    %v580 = vld [vmem:[#allocation4 + $0x98] sm:$0xf]
    %v581 = vld [vmem:[#allocation4 + $0x9c] sm:$0xff]
    %v582 = vld [vmem:[#allocation4 + $0xa4] sm:$0xf]
    %v583 = vld [vmem:[#allocation4 + $0xa8] sm:$0xff]
    %v584 = vld [vmem:[#allocation4 + $0xb0] sm:$0xf]
    %v585 = vld [vmem:[#allocation4 + $0xb4] sm:$0xff]
    %v586 = vld [vmem:[#allocation4 + $0xbc] sm:$0xf]
    %v619 = vunpack.c.l.b16 %v555
    %v620 = vunpack.c.h.b16 %v555
    %v621 = vunpack.c.l.b16 %v556
    %v622 = vunpack.c.l.b16 %v557
    %v623 = vunpack.c.h.b16 %v557
    %v624 = vunpack.c.l.b16 %v558
    %v625 = vunpack.c.l.b16 %v559
    %v626 = vunpack.c.h.b16 %v559
    %v627 = vunpack.c.l.b16 %v560
    %v628 = vunpack.c.l.b16 %v561
    %v629 = vunpack.c.h.b16 %v561
    %v630 = vunpack.c.l.b16 %v562
    %v631 = vunpack.c.l.b16 %v563
    %v632 = vunpack.c.h.b16 %v563
    %v633 = vunpack.c.l.b16 %v564
    %v634 = vunpack.c.l.b16 %v565
    %v635 = vunpack.c.h.b16 %v565
    %v636 = vunpack.c.l.b16 %v566
    %v637 = vunpack.c.l.b16 %v567
    %v638 = vunpack.c.h.b16 %v567
    %v639 = vunpack.c.l.b16 %v568
    %v640 = vunpack.c.l.b16 %v569
    %v641 = vunpack.c.h.b16 %v569
    %v642 = vunpack.c.l.b16 %v570
    %v643 = vunpack.c.l.b16 %v571
    %v644 = vunpack.c.h.b16 %v571
    %v645 = vunpack.c.l.b16 %v572
    %v646 = vunpack.c.l.b16 %v573
    %v647 = vunpack.c.h.b16 %v573
    %v648 = vunpack.c.l.b16 %v574
    %v649 = vunpack.c.l.b16 %v575
    %v650 = vunpack.c.h.b16 %v575
    %v651 = vunpack.c.l.b16 %v576
    %v652 = vunpack.c.l.b16 %v577
    %v653 = vunpack.c.h.b16 %v577
    %v654 = vunpack.c.l.b16 %v578
    %v655 = vunpack.c.l.b16 %v579
    %v656 = vunpack.c.h.b16 %v579
    %v657 = vunpack.c.l.b16 %v580
    %v658 = vunpack.c.l.b16 %v581
    %v659 = vunpack.c.h.b16 %v581
    %v660 = vunpack.c.l.b16 %v582
    %v661 = vunpack.c.l.b16 %v583
    %v662 = vunpack.c.h.b16 %v583
    %v663 = vunpack.c.l.b16 %v584
    %v664 = vunpack.c.l.b16 %v585
    %v665 = vunpack.c.h.b16 %v585
    %v666 = vunpack.c.l.b16 %v586
    %v667 = vpack.c.b16 %v622, %v619
    %v668 = vpack.c.b16 %v623, %v620
    %v669 = vpack.c.b16 %v624, %v621
    %v670 = vpack.c.b16 %v628, %v625
    %v671 = vpack.c.b16 %v629, %v626
    %v672 = vpack.c.b16 %v630, %v627
    %v673 = vpack.c.b16 %v634, %v631
    %v674 = vpack.c.b16 %v635, %v632
    %v675 = vpack.c.b16 %v636, %v633
    %v676 = vpack.c.b16 %v640, %v637
    %v677 = vpack.c.b16 %v641, %v638
    %v678 = vpack.c.b16 %v642, %v639
    %v679 = vpack.c.b16 %v646, %v643
    %v680 = vpack.c.b16 %v647, %v644
    %v681 = vpack.c.b16 %v648, %v645
    %v682 = vpack.c.b16 %v652, %v649
    %v683 = vpack.c.b16 %v653, %v650
    %v684 = vpack.c.b16 %v654, %v651
    %v685 = vpack.c.b16 %v658, %v655
    %v686 = vpack.c.b16 %v659, %v656
    %v687 = vpack.c.b16 %v660, %v657
    %v688 = vpack.c.b16 %v664, %v661
    %v689 = vpack.c.b16 %v665, %v662
    %v690 = vpack.c.b16 %v666, %v663
    %715 = vmatprep.subr.bf16.mxu0 %v668
    %716 = vmatpush1.bf16.msra.mxu0 %v667
    %717 = vmatprep.subr.bf16.mxu0 %v671
    %718 = vmatpush1.bf16.msra.mxu0 %v670
    %719 = vmatprep.subr.bf16.mxu0 %v674
    %720 = vmatpush1.bf16.msra.mxu0 %v673
    %721 = vmatprep.subr.bf16.mxu0 %v677
    %722 = vmatpush1.bf16.msra.mxu0 %v676
    %723 = vmatprep.subr.bf16.mxu0 %v680
    %724 = vmatpush1.bf16.msra.mxu0 %v679
    %725 = vmatprep.subr.bf16.mxu0 %v683
    %726 = vmatpush1.bf16.msra.mxu0 %v682
    %727 = vmatprep.subr.bf16.mxu0 %v686
    %728 = vmatpush1.bf16.msra.mxu0 %v685
    %729 = vmatprep.subr.bf16.mxu0 %v689
    %730 = vmatpush1.bf16.msra.mxu0 %v688
    %731 = vmatprep.subr.bf16.mxu0 0
    %732 = vmatpush1.bf16.msra.mxu0 0
    %733 = vmatprep.subr.bf16.mxu0 0
    %734 = vmatpush1.bf16.msra.mxu0 0
    %735 = vmatprep.subr.bf16.mxu0 0
    %736 = vmatpush1.bf16.msra.mxu0 0
    %737 = vmatprep.subr.bf16.mxu0 0
    %738 = vmatpush1.bf16.msra.mxu0 0
    %739 = vmatprep.subr.bf16.mxu0 0
    %740 = vmatpush1.bf16.msra.mxu0 0
    %741 = vmatprep.subr.bf16.mxu0 0
    %742 = vmatpush1.bf16.msra.mxu0 0
    %743 = vmatprep.subr.bf16.mxu0 0
    %744 = vmatpush1.bf16.msra.mxu0 0
    %745 = vmatprep.subr.bf16.mxu0 0
    %746 = vmatpush1.bf16.msra.mxu0 0
    %747 = vmatprep.mubr.bf16.mxu0 0
    %748 = vmatmul.mubr.bf16.gmra.mrb[0].mxu0 %v554
    %v749 = vpop.f32.mrb[0].mxu0
    %v750 = vadd.f32 0.0, %v749
    %v751 = vpop.f32.mrb[0].mxu0
    %v752 = vadd.f32 0.0, %v751
    %v753 = vpop.f32.mrb[0].mxu0
    %v754 = vpop.f32.mrb[0].mxu0
    %755 = vdwg.mxu0
    %756 = vmatprep.subr.bf16.mxu0 0
    %757 = vmatpush1.bf16.msra.mxu0 %v669
    %758 = vmatprep.subr.bf16.mxu0 0
    %759 = vmatpush1.bf16.msra.mxu0 %v672
    %760 = vmatprep.subr.bf16.mxu0 0
    %761 = vmatpush1.bf16.msra.mxu0 %v675
    %762 = vmatprep.subr.bf16.mxu0 0
    %763 = vmatpush1.bf16.msra.mxu0 %v678
    %764 = vmatprep.subr.bf16.mxu0 0
    %765 = vmatpush1.bf16.msra.mxu0 %v681
    %766 = vmatprep.subr.bf16.mxu0 0
    %767 = vmatpush1.bf16.msra.mxu0 %v684
    %768 = vmatprep.subr.bf16.mxu0 0
    %769 = vmatpush1.bf16.msra.mxu0 %v687
    %770 = vmatprep.subr.bf16.mxu0 0
    %771 = vmatpush1.bf16.msra.mxu0 %v690
    %772 = vmatprep.subr.bf16.mxu0 0
    %773 = vmatpush1.bf16.msra.mxu0 0
    %774 = vmatprep.subr.bf16.mxu0 0
    %775 = vmatpush1.bf16.msra.mxu0 0
    %776 = vmatprep.subr.bf16.mxu0 0
    %777 = vmatpush1.bf16.msra.mxu0 0
    %778 = vmatprep.subr.bf16.mxu0 0
    %779 = vmatpush1.bf16.msra.mxu0 0
    %780 = vmatprep.subr.bf16.mxu0 0
    %781 = vmatpush1.bf16.msra.mxu0 0
    %782 = vmatprep.subr.bf16.mxu0 0
    %783 = vmatpush1.bf16.msra.mxu0 0
    %784 = vmatprep.subr.bf16.mxu0 0
    %785 = vmatpush1.bf16.msra.mxu0 0
    %786 = vmatprep.subr.bf16.mxu0 0
    %787 = vmatpush1.bf16.msra.mxu0 0
    %788 = vmatprep.mubr.bf16.mxu0 0
    %789 = vmatmul.mubr.bf16.gmra.mrb[0].mxu0 %v554
    %v790 = vpop.f32.mrb[0].mxu0
    %v791 = vadd.f32 0.0, %v790
    %v792 = vpop.f32.mrb[0].mxu0
    %v793 = vpop.f32.mrb[0].mxu0
    %v794 = vpop.f32.mrb[0].mxu0
    %795 = vdwg.mxu0
    %v796 = vld [vmem:[%s6] sm:$0x1]
    %v798 = vrot.slane %v750, 6
    %v800 = vsel %vm547, 0.0, %v798
    %v802 = vlaneseq
    %v803 = vshrl.u32 %v802, 7
    %v804 = vsub.s32 0, %v803
    %v805 = vrot.slane %v796, %v804
    %v807 = vadd.f32 %v805, %v800
    %v808 = vadd.f32 %v807, %v752
    %v810 = vrot.slane %v791, 2
    %vm812 = vcmask 1045504
    %v813 = vsel %vm812, %v810, 0.0
    %v814 = vadd.f32 %v808, %v813
    %vm815 = vcmp.ge.f32.partialorder %v814, 0.0
    %v816 = vmul.f32 %v814, 0.1
    %v817 = vsel %vm815, %v814, %v816
    %v818 = vpack.c.bf16 %v817, %v817
    %v819 = vld [vmem:[#allocation6] sm:$0xff]
    %v820 = vld [vmem:[#allocation6 + $0x8] sm:$0xf]
    %v821 = vld [vmem:[#allocation6 + $0xc] sm:$0xff]
    %v822 = vld [vmem:[#allocation6 + $0x14] sm:$0xf]
    %v823 = vld [vmem:[#allocation6 + $0x18] sm:$0xff]
    %v824 = vld [vmem:[#allocation6 + $0x20] sm:$0xf]
    %v825 = vld [vmem:[#allocation6 + $0x24] sm:$0xff]
    %v826 = vld [vmem:[#allocation6 + $0x2c] sm:$0xf]
    %v827 = vld [vmem:[#allocation6 + $0x30] sm:$0xff]
    %v828 = vld [vmem:[#allocation6 + $0x38] sm:$0xf]
    %v829 = vld [vmem:[#allocation6 + $0x3c] sm:$0xff]
    %v830 = vld [vmem:[#allocation6 + $0x44] sm:$0xf]
    %v831 = vld [vmem:[#allocation6 + $0x48] sm:$0xff]
    %v832 = vld [vmem:[#allocation6 + $0x50] sm:$0xf]
    %v833 = vld [vmem:[#allocation6 + $0x54] sm:$0xff]
    %v834 = vld [vmem:[#allocation6 + $0x5c] sm:$0xf]
    %v835 = vld [vmem:[#allocation6 + $0x60] sm:$0xff]
    %v836 = vld [vmem:[#allocation6 + $0x68] sm:$0xf]
    %v837 = vld [vmem:[#allocation6 + $0x6c] sm:$0xff]
    %v838 = vld [vmem:[#allocation6 + $0x74] sm:$0xf]
    %v839 = vld [vmem:[#allocation6 + $0x78] sm:$0xff]
    %v840 = vld [vmem:[#allocation6 + $0x80] sm:$0xf]
    %v841 = vld [vmem:[#allocation6 + $0x84] sm:$0xff]
    %v842 = vld [vmem:[#allocation6 + $0x8c] sm:$0xf]
    %v843 = vld [vmem:[#allocation6 + $0x90] sm:$0xff]
    %v844 = vld [vmem:[#allocation6 + $0x98] sm:$0xf]
    %v845 = vld [vmem:[#allocation6 + $0x9c] sm:$0xff]
    %v846 = vld [vmem:[#allocation6 + $0xa4] sm:$0xf]
    %v847 = vld [vmem:[#allocation6 + $0xa8] sm:$0xff]
    %v848 = vld [vmem:[#allocation6 + $0xb0] sm:$0xf]
    %v849 = vld [vmem:[#allocation6 + $0xb4] sm:$0xff]
    %v850 = vld [vmem:[#allocation6 + $0xbc] sm:$0xf]
    %v883 = vunpack.c.l.b16 %v819
    %v884 = vunpack.c.h.b16 %v819
    %v885 = vunpack.c.l.b16 %v820
    %v886 = vunpack.c.l.b16 %v821
    %v887 = vunpack.c.h.b16 %v821
    %v888 = vunpack.c.l.b16 %v822
    %v889 = vunpack.c.l.b16 %v823
    %v890 = vunpack.c.h.b16 %v823
    %v891 = vunpack.c.l.b16 %v824
    %v892 = vunpack.c.l.b16 %v825
    %v893 = vunpack.c.h.b16 %v825
    %v894 = vunpack.c.l.b16 %v826
    %v895 = vunpack.c.l.b16 %v827
    %v896 = vunpack.c.h.b16 %v827
    %v897 = vunpack.c.l.b16 %v828
    %v898 = vunpack.c.l.b16 %v829
    %v899 = vunpack.c.h.b16 %v829
    %v900 = vunpack.c.l.b16 %v830
    %v901 = vunpack.c.l.b16 %v831
    %v902 = vunpack.c.h.b16 %v831
    %v903 = vunpack.c.l.b16 %v832
    %v904 = vunpack.c.l.b16 %v833
    %v905 = vunpack.c.h.b16 %v833
    %v906 = vunpack.c.l.b16 %v834
    %v907 = vunpack.c.l.b16 %v835
    %v908 = vunpack.c.h.b16 %v835
    %v909 = vunpack.c.l.b16 %v836
    %v910 = vunpack.c.l.b16 %v837
    %v911 = vunpack.c.h.b16 %v837
    %v912 = vunpack.c.l.b16 %v838
    %v913 = vunpack.c.l.b16 %v839
    %v914 = vunpack.c.h.b16 %v839
    %v915 = vunpack.c.l.b16 %v840
    %v916 = vunpack.c.l.b16 %v841
    %v917 = vunpack.c.h.b16 %v841
    %v918 = vunpack.c.l.b16 %v842
    %v919 = vunpack.c.l.b16 %v843
    %v920 = vunpack.c.h.b16 %v843
    %v921 = vunpack.c.l.b16 %v844
    %v922 = vunpack.c.l.b16 %v845
    %v923 = vunpack.c.h.b16 %v845
    %v924 = vunpack.c.l.b16 %v846
    %v925 = vunpack.c.l.b16 %v847
    %v926 = vunpack.c.h.b16 %v847
    %v927 = vunpack.c.l.b16 %v848
    %v928 = vunpack.c.l.b16 %v849
    %v929 = vunpack.c.h.b16 %v849
    %v930 = vunpack.c.l.b16 %v850
    %v931 = vpack.c.b16 %v886, %v883
    %v932 = vpack.c.b16 %v887, %v884
    %v933 = vpack.c.b16 %v888, %v885
    %v934 = vpack.c.b16 %v892, %v889
    %v935 = vpack.c.b16 %v893, %v890
    %v936 = vpack.c.b16 %v894, %v891
    %v937 = vpack.c.b16 %v898, %v895
    %v938 = vpack.c.b16 %v899, %v896
    %v939 = vpack.c.b16 %v900, %v897
    %v940 = vpack.c.b16 %v904, %v901
    %v941 = vpack.c.b16 %v905, %v902
    %v942 = vpack.c.b16 %v906, %v903
    %v943 = vpack.c.b16 %v910, %v907
    %v944 = vpack.c.b16 %v911, %v908
    %v945 = vpack.c.b16 %v912, %v909
    %v946 = vpack.c.b16 %v916, %v913
    %v947 = vpack.c.b16 %v917, %v914
    %v948 = vpack.c.b16 %v918, %v915
    %v949 = vpack.c.b16 %v922, %v919
    %v950 = vpack.c.b16 %v923, %v920
    %v951 = vpack.c.b16 %v924, %v921
    %v952 = vpack.c.b16 %v928, %v925
    %v953 = vpack.c.b16 %v929, %v926
    %v954 = vpack.c.b16 %v930, %v927
    %979 = vmatprep.subr.bf16.mxu0 %v932
    %980 = vmatpush1.bf16.msra.mxu0 %v931
    %981 = vmatprep.subr.bf16.mxu0 %v935
    %982 = vmatpush1.bf16.msra.mxu0 %v934
    %983 = vmatprep.subr.bf16.mxu0 %v938
    %984 = vmatpush1.bf16.msra.mxu0 %v937
    %985 = vmatprep.subr.bf16.mxu0 %v941
    %986 = vmatpush1.bf16.msra.mxu0 %v940
    %987 = vmatprep.subr.bf16.mxu0 %v944
    %988 = vmatpush1.bf16.msra.mxu0 %v943
    %989 = vmatprep.subr.bf16.mxu0 %v947
    %990 = vmatpush1.bf16.msra.mxu0 %v946
    %991 = vmatprep.subr.bf16.mxu0 %v950
    %992 = vmatpush1.bf16.msra.mxu0 %v949
    %993 = vmatprep.subr.bf16.mxu0 %v953
    %994 = vmatpush1.bf16.msra.mxu0 %v952
    %995 = vmatprep.subr.bf16.mxu0 0
    %996 = vmatpush1.bf16.msra.mxu0 0
    %997 = vmatprep.subr.bf16.mxu0 0
    %998 = vmatpush1.bf16.msra.mxu0 0
    %999 = vmatprep.subr.bf16.mxu0 0
    %1000 = vmatpush1.bf16.msra.mxu0 0
    %1001 = vmatprep.subr.bf16.mxu0 0
    %1002 = vmatpush1.bf16.msra.mxu0 0
    %1003 = vmatprep.subr.bf16.mxu0 0
    %1004 = vmatpush1.bf16.msra.mxu0 0
    %1005 = vmatprep.subr.bf16.mxu0 0
    %1006 = vmatpush1.bf16.msra.mxu0 0
    %1007 = vmatprep.subr.bf16.mxu0 0
    %1008 = vmatpush1.bf16.msra.mxu0 0
    %1009 = vmatprep.subr.bf16.mxu0 0
    %1010 = vmatpush1.bf16.msra.mxu0 0
    %1011 = vmatprep.mubr.bf16.mxu0 0
    %1012 = vmatmul.mubr.bf16.gmra.mrb[0].mxu0 %v818
    %v1013 = vpop.f32.mrb[0].mxu0
    %v1014 = vadd.f32 0.0, %v1013
    %v1015 = vpop.f32.mrb[0].mxu0
    %v1016 = vadd.f32 0.0, %v1015
    %v1017 = vpop.f32.mrb[0].mxu0
    %v1018 = vpop.f32.mrb[0].mxu0
    %1019 = vdwg.mxu0
    %1020 = vmatprep.subr.bf16.mxu0 0
    %1021 = vmatpush1.bf16.msra.mxu0 %v933
    %1022 = vmatprep.subr.bf16.mxu0 0
    %1023 = vmatpush1.bf16.msra.mxu0 %v936
    %1024 = vmatprep.subr.bf16.mxu0 0
    %1025 = vmatpush1.bf16.msra.mxu0 %v939
    %1026 = vmatprep.subr.bf16.mxu0 0
    %1027 = vmatpush1.bf16.msra.mxu0 %v942
    %1028 = vmatprep.subr.bf16.mxu0 0
    %1029 = vmatpush1.bf16.msra.mxu0 %v945
    %1030 = vmatprep.subr.bf16.mxu0 0
    %1031 = vmatpush1.bf16.msra.mxu0 %v948
    %1032 = vmatprep.subr.bf16.mxu0 0
    %1033 = vmatpush1.bf16.msra.mxu0 %v951
    %1034 = vmatprep.subr.bf16.mxu0 0
    %1035 = vmatpush1.bf16.msra.mxu0 %v954
    %1036 = vmatprep.subr.bf16.mxu0 0
    %1037 = vmatpush1.bf16.msra.mxu0 0
    %1038 = vmatprep.subr.bf16.mxu0 0
    %1039 = vmatpush1.bf16.msra.mxu0 0
    %1040 = vmatprep.subr.bf16.mxu0 0
    %1041 = vmatpush1.bf16.msra.mxu0 0
    %1042 = vmatprep.subr.bf16.mxu0 0
    %1043 = vmatpush1.bf16.msra.mxu0 0
    %1044 = vmatprep.subr.bf16.mxu0 0
    %1045 = vmatpush1.bf16.msra.mxu0 0
    %1046 = vmatprep.subr.bf16.mxu0 0
    %1047 = vmatpush1.bf16.msra.mxu0 0
    %1048 = vmatprep.subr.bf16.mxu0 0
    %1049 = vmatpush1.bf16.msra.mxu0 0
    %1050 = vmatprep.subr.bf16.mxu0 0
    %1051 = vmatpush1.bf16.msra.mxu0 0
    %1052 = vmatprep.mubr.bf16.mxu0 0
    %1053 = vmatmul.mubr.bf16.gmra.mrb[0].mxu0 %v818
    %v1054 = vpop.f32.mrb[0].mxu0
    %v1055 = vadd.f32 0.0, %v1054
    %v1056 = vpop.f32.mrb[0].mxu0
    %v1057 = vpop.f32.mrb[0].mxu0
    %v1058 = vpop.f32.mrb[0].mxu0
    %1059 = vdwg.mxu0
    %v1060 = vld [vmem:[%s8] sm:$0x1]
    %v1062 = vrot.slane %v1014, 6
    %v1064 = vsel %vm547, 0.0, %v1062
    %v1066 = vlaneseq
    %v1067 = vshrl.u32 %v1066, 7
    %v1068 = vsub.s32 0, %v1067
    %v1069 = vrot.slane %v1060, %v1068
    %v1071 = vadd.f32 %v1069, %v1064
    %v1072 = vadd.f32 %v1071, %v1016
    %v1074 = vrot.slane %v1055, 2
    %v1076 = vsel %vm812, %v1074, 0.0
    %v1077 = vadd.f32 %v1072, %v1076
    %vm1078 = vcmp.ge.f32.partialorder %v1077, 0.0
    %v1079 = vmul.f32 %v1077, 0.1
    %v1080 = vsel %vm1078, %v1077, %v1079
    %v1081 = vpack.c.bf16 %v1080, %v1080
    %v1082 = vld [vmem:[#allocation7] sm:$0xff]
    %v1083 = vld [vmem:[#allocation7 + $0x8] sm:$0xf]
    %v1084 = vld [vmem:[#allocation7 + $0xc] sm:$0xff]
    %v1085 = vld [vmem:[#allocation7 + $0x14] sm:$0xf]
    %v1086 = vld [vmem:[#allocation7 + $0x18] sm:$0xff]
    %v1087 = vld [vmem:[#allocation7 + $0x20] sm:$0xf]
    %v1088 = vld [vmem:[#allocation7 + $0x24] sm:$0xff]
    %v1089 = vld [vmem:[#allocation7 + $0x2c] sm:$0xf]
    %v1090 = vld [vmem:[#allocation7 + $0x30] sm:$0xff]
    %v1091 = vld [vmem:[#allocation7 + $0x38] sm:$0xf]
    %v1092 = vld [vmem:[#allocation7 + $0x3c] sm:$0xff]
    %v1093 = vld [vmem:[#allocation7 + $0x44] sm:$0xf]
    %v1094 = vld [vmem:[#allocation7 + $0x48] sm:$0xff]
    %v1095 = vld [vmem:[#allocation7 + $0x50] sm:$0xf]
    %v1096 = vld [vmem:[#allocation7 + $0x54] sm:$0xff]
    %v1097 = vld [vmem:[#allocation7 + $0x5c] sm:$0xf]
    %v1098 = vld [vmem:[#allocation7 + $0x60] sm:$0xff]
    %v1099 = vld [vmem:[#allocation7 + $0x68] sm:$0xf]
    %v1100 = vld [vmem:[#allocation7 + $0x6c] sm:$0xff]
    %v1101 = vld [vmem:[#allocation7 + $0x74] sm:$0xf]
    %v1102 = vld [vmem:[#allocation7 + $0x78] sm:$0xff]
    %v1103 = vld [vmem:[#allocation7 + $0x80] sm:$0xf]
    %v1104 = vld [vmem:[#allocation7 + $0x84] sm:$0xff]
    %v1105 = vld [vmem:[#allocation7 + $0x8c] sm:$0xf]
    %v1106 = vld [vmem:[#allocation7 + $0x90] sm:$0xff]
    %v1107 = vld [vmem:[#allocation7 + $0x98] sm:$0xf]
    %v1108 = vld [vmem:[#allocation7 + $0x9c] sm:$0xff]
    %v1109 = vld [vmem:[#allocation7 + $0xa4] sm:$0xf]
    %v1110 = vld [vmem:[#allocation7 + $0xa8] sm:$0xff]
    %v1111 = vld [vmem:[#allocation7 + $0xb0] sm:$0xf]
    %v1112 = vld [vmem:[#allocation7 + $0xb4] sm:$0xff]
    %v1113 = vld [vmem:[#allocation7 + $0xbc] sm:$0xf]
    %v1146 = vunpack.c.l.b16 %v1082
    %v1147 = vunpack.c.h.b16 %v1082
    %v1148 = vunpack.c.l.b16 %v1083
    %v1149 = vunpack.c.l.b16 %v1084
    %v1150 = vunpack.c.h.b16 %v1084
    %v1151 = vunpack.c.l.b16 %v1085
    %v1152 = vunpack.c.l.b16 %v1086
    %v1153 = vunpack.c.h.b16 %v1086
    %v1154 = vunpack.c.l.b16 %v1087
    %v1155 = vunpack.c.l.b16 %v1088
    %v1156 = vunpack.c.h.b16 %v1088
    %v1157 = vunpack.c.l.b16 %v1089
    %v1158 = vunpack.c.l.b16 %v1090
    %v1159 = vunpack.c.h.b16 %v1090
    %v1160 = vunpack.c.l.b16 %v1091
    %v1161 = vunpack.c.l.b16 %v1092
    %v1162 = vunpack.c.h.b16 %v1092
    %v1163 = vunpack.c.l.b16 %v1093
    %v1164 = vunpack.c.l.b16 %v1094
    %v1165 = vunpack.c.h.b16 %v1094
    %v1166 = vunpack.c.l.b16 %v1095
    %v1167 = vunpack.c.l.b16 %v1096
    %v1168 = vunpack.c.h.b16 %v1096
    %v1169 = vunpack.c.l.b16 %v1097
    %v1170 = vunpack.c.l.b16 %v1098
    %v1171 = vunpack.c.h.b16 %v1098
    %v1172 = vunpack.c.l.b16 %v1099
    %v1173 = vunpack.c.l.b16 %v1100
    %v1174 = vunpack.c.h.b16 %v1100
    %v1175 = vunpack.c.l.b16 %v1101
    %v1176 = vunpack.c.l.b16 %v1102
    %v1177 = vunpack.c.h.b16 %v1102
    %v1178 = vunpack.c.l.b16 %v1103
    %v1179 = vunpack.c.l.b16 %v1104
    %v1180 = vunpack.c.h.b16 %v1104
    %v1181 = vunpack.c.l.b16 %v1105
    %v1182 = vunpack.c.l.b16 %v1106
    %v1183 = vunpack.c.h.b16 %v1106
    %v1184 = vunpack.c.l.b16 %v1107
    %v1185 = vunpack.c.l.b16 %v1108
    %v1186 = vunpack.c.h.b16 %v1108
    %v1187 = vunpack.c.l.b16 %v1109
    %v1188 = vunpack.c.l.b16 %v1110
    %v1189 = vunpack.c.h.b16 %v1110
    %v1190 = vunpack.c.l.b16 %v1111
    %v1191 = vunpack.c.l.b16 %v1112
    %v1192 = vunpack.c.h.b16 %v1112
    %v1193 = vunpack.c.l.b16 %v1113
    %v1194 = vpack.c.b16 %v1149, %v1146
    %v1195 = vpack.c.b16 %v1150, %v1147
    %v1196 = vpack.c.b16 %v1151, %v1148
    %v1197 = vpack.c.b16 %v1155, %v1152
    %v1198 = vpack.c.b16 %v1156, %v1153
    %v1199 = vpack.c.b16 %v1157, %v1154
    %v1200 = vpack.c.b16 %v1161, %v1158
    %v1201 = vpack.c.b16 %v1162, %v1159
    %v1202 = vpack.c.b16 %v1163, %v1160
    %v1203 = vpack.c.b16 %v1167, %v1164
    %v1204 = vpack.c.b16 %v1168, %v1165
    %v1205 = vpack.c.b16 %v1169, %v1166
    %v1206 = vpack.c.b16 %v1173, %v1170
    %v1207 = vpack.c.b16 %v1174, %v1171
    %v1208 = vpack.c.b16 %v1175, %v1172
    %v1209 = vpack.c.b16 %v1179, %v1176
    %v1210 = vpack.c.b16 %v1180, %v1177
    %v1211 = vpack.c.b16 %v1181, %v1178
    %v1212 = vpack.c.b16 %v1185, %v1182
    %v1213 = vpack.c.b16 %v1186, %v1183
    %v1214 = vpack.c.b16 %v1187, %v1184
    %v1215 = vpack.c.b16 %v1191, %v1188
    %v1216 = vpack.c.b16 %v1192, %v1189
    %v1217 = vpack.c.b16 %v1193, %v1190
    %1242 = vmatprep.subr.bf16.mxu0 %v1195
    %1243 = vmatpush1.bf16.msra.mxu0 %v1194
    %1244 = vmatprep.subr.bf16.mxu0 %v1198
    %1245 = vmatpush1.bf16.msra.mxu0 %v1197
    %1246 = vmatprep.subr.bf16.mxu0 %v1201
    %1247 = vmatpush1.bf16.msra.mxu0 %v1200
    %1248 = vmatprep.subr.bf16.mxu0 %v1204
    %1249 = vmatpush1.bf16.msra.mxu0 %v1203
    %1250 = vmatprep.subr.bf16.mxu0 %v1207
    %1251 = vmatpush1.bf16.msra.mxu0 %v1206
    %1252 = vmatprep.subr.bf16.mxu0 %v1210
    %1253 = vmatpush1.bf16.msra.mxu0 %v1209
    %1254 = vmatprep.subr.bf16.mxu0 %v1213
    %1255 = vmatpush1.bf16.msra.mxu0 %v1212
    %1256 = vmatprep.subr.bf16.mxu0 %v1216
    %1257 = vmatpush1.bf16.msra.mxu0 %v1215
    %1258 = vmatprep.subr.bf16.mxu0 0
    %1259 = vmatpush1.bf16.msra.mxu0 0
    %1260 = vmatprep.subr.bf16.mxu0 0
    %1261 = vmatpush1.bf16.msra.mxu0 0
    %1262 = vmatprep.subr.bf16.mxu0 0
    %1263 = vmatpush1.bf16.msra.mxu0 0
    %1264 = vmatprep.subr.bf16.mxu0 0
    %1265 = vmatpush1.bf16.msra.mxu0 0
    %1266 = vmatprep.subr.bf16.mxu0 0
    %1267 = vmatpush1.bf16.msra.mxu0 0
    %1268 = vmatprep.subr.bf16.mxu0 0
    %1269 = vmatpush1.bf16.msra.mxu0 0
    %1270 = vmatprep.subr.bf16.mxu0 0
    %1271 = vmatpush1.bf16.msra.mxu0 0
    %1272 = vmatprep.subr.bf16.mxu0 0
    %1273 = vmatpush1.bf16.msra.mxu0 0
    %1274 = vmatprep.mubr.bf16.mxu0 0
    %1275 = vmatmul.mubr.bf16.gmra.mrb[0].mxu0 %v1081
    %v1276 = vpop.f32.mrb[0].mxu0
    %v1277 = vadd.f32 0.0, %v1276
    %v1278 = vpop.f32.mrb[0].mxu0
    %v1279 = vadd.f32 0.0, %v1278
    %v1280 = vpop.f32.mrb[0].mxu0
    %v1281 = vpop.f32.mrb[0].mxu0
    %1282 = vdwg.mxu0
    %1283 = vmatprep.subr.bf16.mxu0 0
    %1284 = vmatpush1.bf16.msra.mxu0 %v1196
    %1285 = vmatprep.subr.bf16.mxu0 0
    %1286 = vmatpush1.bf16.msra.mxu0 %v1199
    %1287 = vmatprep.subr.bf16.mxu0 0
    %1288 = vmatpush1.bf16.msra.mxu0 %v1202
    %1289 = vmatprep.subr.bf16.mxu0 0
    %1290 = vmatpush1.bf16.msra.mxu0 %v1205
    %1291 = vmatprep.subr.bf16.mxu0 0
    %1292 = vmatpush1.bf16.msra.mxu0 %v1208
    %1293 = vmatprep.subr.bf16.mxu0 0
    %1294 = vmatpush1.bf16.msra.mxu0 %v1211
    %1295 = vmatprep.subr.bf16.mxu0 0
    %1296 = vmatpush1.bf16.msra.mxu0 %v1214
    %1297 = vmatprep.subr.bf16.mxu0 0
    %1298 = vmatpush1.bf16.msra.mxu0 %v1217
    %1299 = vmatprep.subr.bf16.mxu0 0
    %1300 = vmatpush1.bf16.msra.mxu0 0
    %1301 = vmatprep.subr.bf16.mxu0 0
    %1302 = vmatpush1.bf16.msra.mxu0 0
    %1303 = vmatprep.subr.bf16.mxu0 0
    %1304 = vmatpush1.bf16.msra.mxu0 0
    %1305 = vmatprep.subr.bf16.mxu0 0
    %1306 = vmatpush1.bf16.msra.mxu0 0
    %1307 = vmatprep.subr.bf16.mxu0 0
    %1308 = vmatpush1.bf16.msra.mxu0 0
    %1309 = vmatprep.subr.bf16.mxu0 0
    %1310 = vmatpush1.bf16.msra.mxu0 0
    %1311 = vmatprep.subr.bf16.mxu0 0
    %1312 = vmatpush1.bf16.msra.mxu0 0
    %1313 = vmatprep.subr.bf16.mxu0 0
    %1314 = vmatpush1.bf16.msra.mxu0 0
    %1315 = vmatprep.mubr.bf16.mxu0 0
    %1316 = vmatmul.mubr.bf16.gmra.mrb[0].mxu0 %v1081
    %v1317 = vpop.f32.mrb[0].mxu0
    %v1318 = vadd.f32 0.0, %v1317
    %v1319 = vpop.f32.mrb[0].mxu0
    %v1320 = vpop.f32.mrb[0].mxu0
    %v1321 = vpop.f32.mrb[0].mxu0
    %1322 = vdwg.mxu0
    %v1323 = vld [vmem:[%s10] sm:$0x1]
    %v1325 = vrot.slane %v1277, 6
    %v1327 = vsel %vm547, 0.0, %v1325
    %v1329 = vlaneseq
    %v1330 = vshrl.u32 %v1329, 7
    %v1331 = vsub.s32 0, %v1330
    %v1332 = vrot.slane %v1323, %v1331
    %v1334 = vadd.f32 %v1332, %v1327
    %v1335 = vadd.f32 %v1334, %v1279
    %v1337 = vrot.slane %v1318, 2
    %v1339 = vsel %vm812, %v1337, 0.0
    %v1340 = vadd.f32 %v1335, %v1339
    %vm1341 = vcmp.ge.f32.partialorder %v1340, 0.0
    %v1342 = vmul.f32 %v1340, 0.1
    %v1343 = vsel %vm1341, %v1340, %v1342
    %v1345 = vrot.slane %v1343, 2
    %v1347 = vrot.slane %v1343, 4
    %v1349 = vrot.slane %v1343, 6
    %v1351 = vpack.c.bf16 %v1343, %v1343
    %v1352 = vpack.c.bf16 %v1345, %v1345
    %v1353 = vpack.c.bf16 %v1347, %v1347
    %v1354 = vpack.c.bf16 %v1349, %v1349
    %v1355 = vld [vmem:[%s11] sm:$0xf]
    %v1356 = vld [vmem:[%s11 + $0x4] sm:$0xf]
    %v1357 = vld [vmem:[%s11 + $0x8] sm:$0xf]
    %v1358 = vld [vmem:[%s11 + $0xc] sm:$0xf]
    %v1359 = vld [vmem:[%s11 + $0x10] sm:$0xf]
    %v1360 = vld [vmem:[%s11 + $0x14] sm:$0xf]
    %v1361 = vld [vmem:[%s11 + $0x18] sm:$0xf]
    %v1362 = vld [vmem:[%s11 + $0x1c] sm:$0xf]
    %v1363 = vld [vmem:[%s11 + $0x20] sm:$0xf]
    %v1364 = vld [vmem:[%s11 + $0x24] sm:$0xf]
    %v1365 = vld [vmem:[%s11 + $0x28] sm:$0xf]
    %v1366 = vld [vmem:[%s11 + $0x2c] sm:$0xf]
    %v1367 = vld [vmem:[%s11 + $0x30] sm:$0xf]
    %v1368 = vld [vmem:[%s11 + $0x34] sm:$0xf]
    %v1369 = vld [vmem:[%s11 + $0x38] sm:$0xf]
    %v1370 = vld [vmem:[%s11 + $0x3c] sm:$0xf]
    %v1371 = vld [vmem:[%s11 + $0x40] sm:$0xf]
    %v1372 = vld [vmem:[%s11 + $0x44] sm:$0xf]
    %v1373 = vld [vmem:[%s11 + $0x48] sm:$0xf]
    %v1374 = vld [vmem:[%s11 + $0x4c] sm:$0xf]
    %v1375 = vld [vmem:[%s11 + $0x50] sm:$0xf]
    %v1376 = vld [vmem:[%s11 + $0x54] sm:$0xf]
    %v1377 = vld [vmem:[%s11 + $0x58] sm:$0xf]
    %v1378 = vld [vmem:[%s11 + $0x5c] sm:$0xf]
    %v1379 = vld [vmem:[%s11 + $0x60] sm:$0xf]
    %v1380 = vld [vmem:[%s11 + $0x64] sm:$0xf]
    %v1381 = vld [vmem:[%s11 + $0x68] sm:$0xf]
    %v1382 = vld [vmem:[%s11 + $0x6c] sm:$0xf]
    %v1383 = vld [vmem:[%s11 + $0x70] sm:$0xf]
    %v1384 = vld [vmem:[%s11 + $0x74] sm:$0xf]
    %v1385 = vld [vmem:[%s11 + $0x78] sm:$0xf]
    %v1386 = vld [vmem:[%s11 + $0x7c] sm:$0xf]
    %v1387 = vld [vmem:[%s11 + $0x80] sm:$0xf]
    %v1388 = vld [vmem:[%s11 + $0x84] sm:$0xf]
    %v1389 = vld [vmem:[%s11 + $0x88] sm:$0xf]
    %v1390 = vld [vmem:[%s11 + $0x8c] sm:$0xf]
    %v1391 = vld [vmem:[%s11 + $0x90] sm:$0xf]
    %v1392 = vld [vmem:[%s11 + $0x94] sm:$0xf]
    %v1393 = vld [vmem:[%s11 + $0x98] sm:$0xf]
    %v1394 = vld [vmem:[%s11 + $0x9c] sm:$0xf]
    %v1395 = vld [vmem:[%s11 + $0xa0] sm:$0xf]
    %v1396 = vld [vmem:[%s11 + $0xa4] sm:$0xf]
    %v1397 = vld [vmem:[%s11 + $0xa8] sm:$0xf]
    %v1398 = vld [vmem:[%s11 + $0xac] sm:$0xf]
    %v1399 = vld [vmem:[%s11 + $0xb0] sm:$0xf]
    %v1400 = vld [vmem:[%s11 + $0xb4] sm:$0xf]
    %v1401 = vld [vmem:[%s11 + $0xb8] sm:$0xf]
    %v1402 = vld [vmem:[%s11 + $0xbc] sm:$0xf]
    %v1403 = vld [vmem:[%s11 + $0xc0] sm:$0xf]
    %v1404 = vld [vmem:[%s11 + $0xc4] sm:$0xf]
    %v1405 = vld [vmem:[%s11 + $0xc8] sm:$0xf]
    %v1406 = vld [vmem:[%s11 + $0xcc] sm:$0xf]
    %v1407 = vld [vmem:[%s11 + $0xd0] sm:$0xf]
    %v1408 = vld [vmem:[%s11 + $0xd4] sm:$0xf]
    %v1409 = vld [vmem:[%s11 + $0xd8] sm:$0xf]
    %v1410 = vld [vmem:[%s11 + $0xdc] sm:$0xf]
    %v1411 = vld [vmem:[%s11 + $0xe0] sm:$0xf]
    %v1412 = vld [vmem:[%s11 + $0xe4] sm:$0xf]
    %v1413 = vld [vmem:[%s11 + $0xe8] sm:$0xf]
    %v1414 = vld [vmem:[%s11 + $0xec] sm:$0xf]
    %v1415 = vld [vmem:[%s11 + $0xf0] sm:$0xf]
    %v1416 = vld [vmem:[%s11 + $0xf4] sm:$0xf]
    %v1417 = vld [vmem:[%s11 + $0xf8] sm:$0xf]
    %v1418 = vld [vmem:[%s11 + $0xfc] sm:$0xf]
    %v1419 = vld [vmem:[%s12] sm:$0x1]
    %v1421 = vlaneseq
    %v1422 = vshrl.u32 %v1421, 7
    %v1423 = vsub.s32 0, %v1422
    %v1424 = vrot.slane %v1419, %v1423
    %v1490 = vunpack.c.l.b16 %v1355
    %v1491 = vunpack.c.l.b16 %v1356
    %v1492 = vunpack.c.l.b16 %v1357
    %v1493 = vunpack.c.l.b16 %v1358
    %v1494 = vunpack.c.l.b16 %v1359
    %v1495 = vunpack.c.l.b16 %v1360
    %v1496 = vunpack.c.l.b16 %v1361
    %v1497 = vunpack.c.l.b16 %v1362
    %v1498 = vunpack.c.l.b16 %v1363
    %v1499 = vunpack.c.l.b16 %v1364
    %v1500 = vunpack.c.l.b16 %v1365
    %v1501 = vunpack.c.l.b16 %v1366
    %v1502 = vunpack.c.l.b16 %v1367
    %v1503 = vunpack.c.l.b16 %v1368
    %v1504 = vunpack.c.l.b16 %v1369
    %v1505 = vunpack.c.l.b16 %v1370
    %v1506 = vunpack.c.l.b16 %v1371
    %v1507 = vunpack.c.l.b16 %v1372
    %v1508 = vunpack.c.l.b16 %v1373
    %v1509 = vunpack.c.l.b16 %v1374
    %v1510 = vunpack.c.l.b16 %v1375
    %v1511 = vunpack.c.l.b16 %v1376
    %v1512 = vunpack.c.l.b16 %v1377
    %v1513 = vunpack.c.l.b16 %v1378
    %v1514 = vunpack.c.l.b16 %v1379
    %v1515 = vunpack.c.l.b16 %v1380
    %v1516 = vunpack.c.l.b16 %v1381
    %v1517 = vunpack.c.l.b16 %v1382
    %v1518 = vunpack.c.l.b16 %v1383
    %v1519 = vunpack.c.l.b16 %v1384
    %v1520 = vunpack.c.l.b16 %v1385
    %v1521 = vunpack.c.l.b16 %v1386
    %v1522 = vunpack.c.l.b16 %v1387
    %v1523 = vunpack.c.l.b16 %v1388
    %v1524 = vunpack.c.l.b16 %v1389
    %v1525 = vunpack.c.l.b16 %v1390
    %v1526 = vunpack.c.l.b16 %v1391
    %v1527 = vunpack.c.l.b16 %v1392
    %v1528 = vunpack.c.l.b16 %v1393
    %v1529 = vunpack.c.l.b16 %v1394
    %v1530 = vunpack.c.l.b16 %v1395
    %v1531 = vunpack.c.l.b16 %v1396
    %v1532 = vunpack.c.l.b16 %v1397
    %v1533 = vunpack.c.l.b16 %v1398
    %v1534 = vunpack.c.l.b16 %v1399
    %v1535 = vunpack.c.l.b16 %v1400
    %v1536 = vunpack.c.l.b16 %v1401
    %v1537 = vunpack.c.l.b16 %v1402
    %v1538 = vunpack.c.l.b16 %v1403
    %v1539 = vunpack.c.l.b16 %v1404
    %v1540 = vunpack.c.l.b16 %v1405
    %v1541 = vunpack.c.l.b16 %v1406
    %v1542 = vunpack.c.l.b16 %v1407
    %v1543 = vunpack.c.l.b16 %v1408
    %v1544 = vunpack.c.l.b16 %v1409
    %v1545 = vunpack.c.l.b16 %v1410
    %v1546 = vunpack.c.l.b16 %v1411
    %v1547 = vunpack.c.l.b16 %v1412
    %v1548 = vunpack.c.l.b16 %v1413
    %v1549 = vunpack.c.l.b16 %v1414
    %v1550 = vunpack.c.l.b16 %v1415
    %v1551 = vunpack.c.l.b16 %v1416
    %v1552 = vunpack.c.l.b16 %v1417
    %v1553 = vunpack.c.l.b16 %v1418
    %v1554 = vpack.c.b16 %v1491, %v1490
    %v1555 = vpack.c.b16 %v1493, %v1492
    %v1556 = vpack.c.b16 %v1495, %v1494
    %v1557 = vpack.c.b16 %v1497, %v1496
    %v1558 = vpack.c.b16 %v1499, %v1498
    %v1559 = vpack.c.b16 %v1501, %v1500
    %v1560 = vpack.c.b16 %v1503, %v1502
    %v1561 = vpack.c.b16 %v1505, %v1504
    %v1562 = vpack.c.b16 %v1507, %v1506
    %v1563 = vpack.c.b16 %v1509, %v1508
    %v1564 = vpack.c.b16 %v1511, %v1510
    %v1565 = vpack.c.b16 %v1513, %v1512
    %v1566 = vpack.c.b16 %v1515, %v1514
    %v1567 = vpack.c.b16 %v1517, %v1516
    %v1568 = vpack.c.b16 %v1519, %v1518
    %v1569 = vpack.c.b16 %v1521, %v1520
    %v1570 = vpack.c.b16 %v1523, %v1522
    %v1571 = vpack.c.b16 %v1525, %v1524
    %v1572 = vpack.c.b16 %v1527, %v1526
    %v1573 = vpack.c.b16 %v1529, %v1528
    %v1574 = vpack.c.b16 %v1531, %v1530
    %v1575 = vpack.c.b16 %v1533, %v1532
    %v1576 = vpack.c.b16 %v1535, %v1534
    %v1577 = vpack.c.b16 %v1537, %v1536
    %v1578 = vpack.c.b16 %v1539, %v1538
    %v1579 = vpack.c.b16 %v1541, %v1540
    %v1580 = vpack.c.b16 %v1543, %v1542
    %v1581 = vpack.c.b16 %v1545, %v1544
    %v1582 = vpack.c.b16 %v1547, %v1546
    %v1583 = vpack.c.b16 %v1549, %v1548
    %v1584 = vpack.c.b16 %v1551, %v1550
    %v1585 = vpack.c.b16 %v1553, %v1552
    %1618 = vmatprep.subr.bf16.mxu0 0
    %1619 = vmatpush1.bf16.msra.mxu0 %v1554
    %1620 = vmatprep.subr.bf16.mxu0 0
    %1621 = vmatpush1.bf16.msra.mxu0 %v1555
    %1622 = vmatprep.subr.bf16.mxu0 0
    %1623 = vmatpush1.bf16.msra.mxu0 %v1556
    %1624 = vmatprep.subr.bf16.mxu0 0
    %1625 = vmatpush1.bf16.msra.mxu0 %v1557
    %1626 = vmatprep.subr.bf16.mxu0 0
    %1627 = vmatpush1.bf16.msra.mxu0 %v1558
    %1628 = vmatprep.subr.bf16.mxu0 0
    %1629 = vmatpush1.bf16.msra.mxu0 %v1559
    %1630 = vmatprep.subr.bf16.mxu0 0
    %1631 = vmatpush1.bf16.msra.mxu0 %v1560
    %1632 = vmatprep.subr.bf16.mxu0 0
    %1633 = vmatpush1.bf16.msra.mxu0 %v1561
    %1634 = vmatprep.subr.bf16.mxu0 0
    %1635 = vmatpush1.bf16.msra.mxu0 %v1562
    %1636 = vmatprep.subr.bf16.mxu0 0
    %1637 = vmatpush1.bf16.msra.mxu0 %v1563
    %1638 = vmatprep.subr.bf16.mxu0 0
    %1639 = vmatpush1.bf16.msra.mxu0 %v1564
    %1640 = vmatprep.subr.bf16.mxu0 0
    %1641 = vmatpush1.bf16.msra.mxu0 %v1565
    %1642 = vmatprep.subr.bf16.mxu0 0
    %1643 = vmatpush1.bf16.msra.mxu0 %v1566
    %1644 = vmatprep.subr.bf16.mxu0 0
    %1645 = vmatpush1.bf16.msra.mxu0 %v1567
    %1646 = vmatprep.subr.bf16.mxu0 0
    %1647 = vmatpush1.bf16.msra.mxu0 %v1568
    %1648 = vmatprep.subr.bf16.mxu0 0
    %1649 = vmatpush1.bf16.msra.mxu0 %v1569
    %1650 = vmatprep.mubr.bf16.mxu0 %v1352
    %1651 = vmatmul.mubr.bf16.gmra.mrb[0].mxu0 %v1351
    %v1652 = vpop.f32.mrb[0].mxu0
    %v1653 = vadd.f32 %v1424, %v1652
    %v1654 = vpop.f32.mrb[0].mxu0
    %v1655 = vpop.f32.mrb[0].mxu0
    %v1656 = vpop.f32.mrb[0].mxu0
    %1657 = vdwg.mxu0
    %1658 = vmatprep.subr.bf16.mxu0 0
    %1659 = vmatpush1.bf16.msra.mxu0 %v1570
    %1660 = vmatprep.subr.bf16.mxu0 0
    %1661 = vmatpush1.bf16.msra.mxu0 %v1571
    %1662 = vmatprep.subr.bf16.mxu0 0
    %1663 = vmatpush1.bf16.msra.mxu0 %v1572
    %1664 = vmatprep.subr.bf16.mxu0 0
    %1665 = vmatpush1.bf16.msra.mxu0 %v1573
    %1666 = vmatprep.subr.bf16.mxu0 0
    %1667 = vmatpush1.bf16.msra.mxu0 %v1574
    %1668 = vmatprep.subr.bf16.mxu0 0
    %1669 = vmatpush1.bf16.msra.mxu0 %v1575
    %1670 = vmatprep.subr.bf16.mxu0 0
    %1671 = vmatpush1.bf16.msra.mxu0 %v1576
    %1672 = vmatprep.subr.bf16.mxu0 0
    %1673 = vmatpush1.bf16.msra.mxu0 %v1577
    %1674 = vmatprep.subr.bf16.mxu0 0
    %1675 = vmatpush1.bf16.msra.mxu0 %v1578
    %1676 = vmatprep.subr.bf16.mxu0 0
    %1677 = vmatpush1.bf16.msra.mxu0 %v1579
    %1678 = vmatprep.subr.bf16.mxu0 0
    %1679 = vmatpush1.bf16.msra.mxu0 %v1580
    %1680 = vmatprep.subr.bf16.mxu0 0
    %1681 = vmatpush1.bf16.msra.mxu0 %v1581
    %1682 = vmatprep.subr.bf16.mxu0 0
    %1683 = vmatpush1.bf16.msra.mxu0 %v1582
    %1684 = vmatprep.subr.bf16.mxu0 0
    %1685 = vmatpush1.bf16.msra.mxu0 %v1583
    %1686 = vmatprep.subr.bf16.mxu0 0
    %1687 = vmatpush1.bf16.msra.mxu0 %v1584
    %1688 = vmatprep.subr.bf16.mxu0 0
    %1689 = vmatpush1.bf16.msra.mxu0 %v1585
    %1690 = vmatprep.mubr.bf16.mxu0 %v1354
    %1691 = vmatmul.mubr.bf16.gmra.mrb[0].mxu0 %v1353
    %v1692 = vpop.f32.mrb[0].mxu0
    %v1693 = vadd.f32 %v1653, %v1692
    %v1694 = vpop.f32.mrb[0].mxu0
    %v1695 = vpop.f32.mrb[0].mxu0
    %v1696 = vpop.f32.mrb[0].mxu0
    %1697 = vdwg.mxu0
    %vm1698 = vcmp.ge.f32.partialorder %v1693, 0.0
    %v1699 = vmul.f32 %v1693, 0.1
    %v1700 = vsel %vm1698, %v1693, %v1699
    %v1701 = vpack.c.bf16 %v1700, %v1700
    %v1702 = vld [vmem:[#allocation9] sm:$0xff]
    %v1703 = vld [vmem:[#allocation9 + $0x8] sm:$0xff]
    %v1704 = vld [vmem:[#allocation9 + $0x10] sm:$0xff]
    %v1705 = vld [vmem:[#allocation9 + $0x18] sm:$0xff]
    %v1706 = vld [vmem:[#allocation9 + $0x20] sm:$0xff]
    %v1707 = vld [vmem:[#allocation9 + $0x28] sm:$0xff]
    %v1708 = vld [vmem:[#allocation9 + $0x30] sm:$0xff]
    %v1709 = vld [vmem:[#allocation9 + $0x38] sm:$0xff]
    %v1710 = vld [vmem:[#allocation9 + $0x40] sm:$0xff]
    %v1711 = vld [vmem:[#allocation9 + $0x48] sm:$0xff]
    %v1712 = vld [vmem:[#allocation9 + $0x50] sm:$0xff]
    %v1713 = vld [vmem:[#allocation9 + $0x58] sm:$0xff]
    %v1714 = vld [vmem:[#allocation9 + $0x60] sm:$0xff]
    %v1715 = vld [vmem:[#allocation9 + $0x68] sm:$0xff]
    %v1716 = vld [vmem:[#allocation9 + $0x70] sm:$0xff]
    %v1717 = vld [vmem:[#allocation9 + $0x78] sm:$0xff]
    %v1718 = vld [vmem:[%s14] sm:$0x3]
    %v1720 = vlaneseq
    %v1721 = vshrl.u32 %v1720, 7
    %v1722 = vsub.s32 0, %v1721
    %v1723 = vrot.slane %v1718, %v1722
    %v1724 = vlaneseq
    %v1725 = vshrl.u32 %v1724, 7
    %v1726 = vsub.s32 1, %v1725
    %v1727 = vrot.slane %v1718, %v1726
    %v1746 = vunpack.c.l.b16 %v1702
    %v1747 = vunpack.c.h.b16 %v1702
    %v1748 = vunpack.c.l.b16 %v1703
    %v1749 = vunpack.c.h.b16 %v1703
    %v1750 = vunpack.c.l.b16 %v1704
    %v1751 = vunpack.c.h.b16 %v1704
    %v1752 = vunpack.c.l.b16 %v1705
    %v1753 = vunpack.c.h.b16 %v1705
    %v1754 = vunpack.c.l.b16 %v1706
    %v1755 = vunpack.c.h.b16 %v1706
    %v1756 = vunpack.c.l.b16 %v1707
    %v1757 = vunpack.c.h.b16 %v1707
    %v1758 = vunpack.c.l.b16 %v1708
    %v1759 = vunpack.c.h.b16 %v1708
    %v1760 = vunpack.c.l.b16 %v1709
    %v1761 = vunpack.c.h.b16 %v1709
    %v1762 = vunpack.c.l.b16 %v1710
    %v1763 = vunpack.c.h.b16 %v1710
    %v1764 = vunpack.c.l.b16 %v1711
    %v1765 = vunpack.c.h.b16 %v1711
    %v1766 = vunpack.c.l.b16 %v1712
    %v1767 = vunpack.c.h.b16 %v1712
    %v1768 = vunpack.c.l.b16 %v1713
    %v1769 = vunpack.c.h.b16 %v1713
    %v1770 = vunpack.c.l.b16 %v1714
    %v1771 = vunpack.c.h.b16 %v1714
    %v1772 = vunpack.c.l.b16 %v1715
    %v1773 = vunpack.c.h.b16 %v1715
    %v1774 = vunpack.c.l.b16 %v1716
    %v1775 = vunpack.c.h.b16 %v1716
    %v1776 = vunpack.c.l.b16 %v1717
    %v1777 = vunpack.c.h.b16 %v1717
    %v1778 = vpack.c.b16 %v1748, %v1746
    %v1779 = vpack.c.b16 %v1749, %v1747
    %v1780 = vpack.c.b16 %v1752, %v1750
    %v1781 = vpack.c.b16 %v1753, %v1751
    %v1782 = vpack.c.b16 %v1756, %v1754
    %v1783 = vpack.c.b16 %v1757, %v1755
    %v1784 = vpack.c.b16 %v1760, %v1758
    %v1785 = vpack.c.b16 %v1761, %v1759
    %v1786 = vpack.c.b16 %v1764, %v1762
    %v1787 = vpack.c.b16 %v1765, %v1763
    %v1788 = vpack.c.b16 %v1768, %v1766
    %v1789 = vpack.c.b16 %v1769, %v1767
    %v1790 = vpack.c.b16 %v1772, %v1770
    %v1791 = vpack.c.b16 %v1773, %v1771
    %v1792 = vpack.c.b16 %v1776, %v1774
    %v1793 = vpack.c.b16 %v1777, %v1775
    %1810 = vmatprep.subr.bf16.mxu0 %v1779
    %1811 = vmatpush1.bf16.msra.mxu0 %v1778
    %1812 = vmatprep.subr.bf16.mxu0 %v1781
    %1813 = vmatpush1.bf16.msra.mxu0 %v1780
    %1814 = vmatprep.subr.bf16.mxu0 %v1783
    %1815 = vmatpush1.bf16.msra.mxu0 %v1782
    %1816 = vmatprep.subr.bf16.mxu0 %v1785
    %1817 = vmatpush1.bf16.msra.mxu0 %v1784
    %1818 = vmatprep.subr.bf16.mxu0 %v1787
    %1819 = vmatpush1.bf16.msra.mxu0 %v1786
    %1820 = vmatprep.subr.bf16.mxu0 %v1789
    %1821 = vmatpush1.bf16.msra.mxu0 %v1788
    %1822 = vmatprep.subr.bf16.mxu0 %v1791
    %1823 = vmatpush1.bf16.msra.mxu0 %v1790
    %1824 = vmatprep.subr.bf16.mxu0 %v1793
    %1825 = vmatpush1.bf16.msra.mxu0 %v1792
    %1826 = vmatprep.subr.bf16.mxu0 0
    %1827 = vmatpush1.bf16.msra.mxu0 0
    %1828 = vmatprep.subr.bf16.mxu0 0
    %1829 = vmatpush1.bf16.msra.mxu0 0
    %1830 = vmatprep.subr.bf16.mxu0 0
    %1831 = vmatpush1.bf16.msra.mxu0 0
    %1832 = vmatprep.subr.bf16.mxu0 0
    %1833 = vmatpush1.bf16.msra.mxu0 0
    %1834 = vmatprep.subr.bf16.mxu0 0
    %1835 = vmatpush1.bf16.msra.mxu0 0
    %1836 = vmatprep.subr.bf16.mxu0 0
    %1837 = vmatpush1.bf16.msra.mxu0 0
    %1838 = vmatprep.subr.bf16.mxu0 0
    %1839 = vmatpush1.bf16.msra.mxu0 0
    %1840 = vmatprep.subr.bf16.mxu0 0
    %1841 = vmatpush1.bf16.msra.mxu0 0
    %1842 = vmatprep.mubr.bf16.mxu0 0
    %1843 = vmatmul.mubr.bf16.gmra.mrb[0].mxu0 %v1701
    %v1844 = vpop.f32.mrb[0].mxu0
    %v1845 = vadd.f32 %v1723, %v1844
    %v1846 = vpop.f32.mrb[0].mxu0
    %v1847 = vadd.f32 %v1727, %v1846
    %v1848 = vpop.f32.mrb[0].mxu0
    %v1849 = vpop.f32.mrb[0].mxu0
    %1850 = vdwg.mxu0
    %v1853 = vcombine.low %v1845, %v1847
    %v1855 = vunpack.c.l.s4 1983009808
    %v1856 = vunpack.c.0.s8 %v1855
    %v1857 = vlaneseq
    %v1858 = vshrl.u32 %v1857, 7
    %v1859 = vsub.s32 %v1856, %v1858
    %v1860 = vrot.slane %v1853, %v1859
    %1862 = vst [vmem:[%s15] sm:$0xf] %v1860
    // Predicated region
    $region82: #{yolo_forward.1} parent=1 // pred_check
      _
    $region83: #{yolo_forward.1} parent=1 // pred_check_branch
      %1864 = sbr.rel (0) target = $region85
    $region84: #{yolo_forward.1} parent=1 // pred_region
      _
    $region85: #{yolo_forward.1} parent=1 // pred_fallthru
      _
    // Predicated region
    $region86: #{yolo_forward.1} parent=1 // pred_check
      _
    $region87: #{yolo_forward.1} parent=1 // pred_check_branch
      %1866 = sbr.rel (0) target = $region89
    $region88: #{yolo_forward.1} parent=1 // pred_region
      _
    $region89: #{yolo_forward.1} parent=1 // pred_fallthru
      _
    %1867 = vsyncpa [#allocation3], 1
    %1868 = vsyncpa [#allocation5], 1
    %1869 = vsyncpa [#allocation8], 1

</llo_original>
